<compile_context>
chip_gen: v7x
topology: tpu7x:2x2x1
jax: 0.10.0
libtpu: 0.0.40
codegen_flags: <defaults>
</compile_context>

<pallas_src>
import jax
import jax.numpy as jnp
from jax.experimental import pallas as pl
from jax.experimental.pallas import tpu as pltpu


def _round_up(a, b):
    return ((a + b - 1) // b) * b


def _vmem_budget_bytes():
    """~75% of this generation's per-core VMEM (fallback: v7x's 64 MiB)."""
    cap = None
    if hasattr(pltpu, "get_tpu_info"):
        try:  # hardware query used only to size tiles, never for correctness
            cap = getattr(pltpu.get_tpu_info(), "vmem_capacity_bytes", None)
        except Exception:
            cap = None
    if not cap:
        cap = 64 << 20
    return (int(cap) * 3) // 4


def _vmem_estimate(tm, ti, H, R, x_bytes, out_bytes, c_bytes):
    """Rough VMEM footprint of one pipeline configuration."""
    weights = 2 * (H * 2 * R + 2 * R * ti + ti * R + R * H) * c_bytes  # double-buffered
    io = 2 * tm * H * (x_bytes + out_bytes)                            # double-buffered x / out tiles
    scratch = tm * 2 * R * 4 + tm * R * 4                              # f32 rank-proj cache + down acc
    temps = 4 * tm * ti * 4                                            # gate/up/inter temporaries headroom
    return weights + io + scratch + temps


def _svd_mlp_kernel(x_ref, wguv_ref, wgu_ref, wuu_ref, wdv_ref, wdu_ref,
                    o_ref, g_scr, u_scr, down_acc):
    """One (token-tile i, intermediate-tile j) grid step.

    x_ref   : (TM, H)  bf16          wguv_ref: (H, 2R) bf16  [Wgv || Wuv]
    wgu_ref : (R, TI)  bf16          wuu_ref : (R, TI) bf16
    wdv_ref : (TI, R)  bf16          wdu_ref : (R, H)  bf16
    o_ref   : (TM, H)
    g_scr / u_scr : (TM, R) f32 scratch (rank projection, cached per token tile)
    down_acc      : (TM, R) f32 accumulator over intermediate tiles
    """
    j = pl.program_id(1)
    cdt = wguv_ref.dtype            # MXU operand dtype (bf16)
    R = wgu_ref.shape[0]

    @pl.when(j == 0)
    def _init():
        # Fused gate/up rank projection, computed once per token tile.
        guv = jnp.dot(x_ref[...], wguv_ref[...],
                      preferred_element_type=jnp.float32)
        g_scr[...] = guv[:, :R]
        u_scr[...] = guv[:, R:]
        down_acc[...] = jnp.zeros_like(down_acc)

    gate = jnp.dot(g_scr[...].astype(cdt), wgu_ref[...],
                   preferred_element_type=jnp.float32).astype(cdt)
    up = jnp.dot(u_scr[...].astype(cdt), wuu_ref[...],
                 preferred_element_type=jnp.float32).astype(cdt)
    # silu(g) = g * sigmoid(g) = 0.5*g*(1 + tanh(g/2))  -> single EUP op, bf16 VPU math.
    half = gate * 0.5
    inter = (half + half * jnp.tanh(half)) * up
    down_acc[...] += jnp.dot(inter, wdv_ref[...],
                             preferred_element_type=jnp.float32)

    @pl.when(j == pl.num_programs(1) - 1)
    def _finalize():
        out = jnp.dot(down_acc[...].astype(cdt), wdu_ref[...],
                      preferred_element_type=jnp.float32)
        o_ref[...] = out.astype(o_ref.dtype)


def svd_deepseek_mlp(x, params, *, token_tile=512, inter_tile=2048,
                     compute_dtype=jnp.bfloat16, out_dtype=None):
    """x: [batch, seq, hidden].  params: dict of [in, out]-transposed weights."""
    B, S, H = x.shape
    T = B * S
    out_dtype = x.dtype if out_dtype is None else out_dtype

    wgv, wgu = params["gate_v"], params["gate_u"]   # (H, R), (R, I)
    wuv, wuu = params["up_v"], params["up_u"]       # (H, R), (R, I)
    wdv, wdu = params["down_v"], params["down_u"]   # (I, R), (R, H)
    R = wgv.shape[1]
    I = wgu.shape[1]

    x_bytes = jnp.dtype(compute_dtype).itemsize
    out_bytes = jnp.dtype(out_dtype).itemsize
    c_bytes = jnp.dtype(compute_dtype).itemsize

    # ---- tile selection (generation-aware VMEM budget) ----
    budget = _vmem_budget_bytes()
    tm = min(_round_up(token_tile, 8), _round_up(T, 8))
    if T >= 16 and _round_up(T, tm) // tm < 2:
        # >= 2 token tiles so the "parallel" axis can use both v7x TensorCores.
        tm = _round_up((T + 1) // 2, 8)
    ti = min(_round_up(inter_tile, 128), _round_up(I, 128))
    while ti > 256 and _vmem_estimate(tm, ti, H, R, x_bytes, out_bytes, c_bytes) > budget:
        ti = max(256, _round_up(ti // 2, 128))
    while tm > 64 and _vmem_estimate(tm, ti, H, R, x_bytes, out_bytes, c_bytes) > budget:
        tm = max(64, _round_up(tm // 2, 8))

    T_pad = _round_up(T, tm)
    I_pad = _round_up(I, ti)
    n_tok = T_pad // tm
    n_int = I_pad // ti

    # ---- operands: bf16 MXU inputs, fused [Wgv || Wuv], zero-pad I to tile multiple ----
    wguv_c = jnp.concatenate([wgv, wuv], axis=1).astype(compute_dtype)   # (H, 2R)
    wgu_c = wgu.astype(compute_dtype)
    wuu_c = wuu.astype(compute_dtype)
    wdv_c = wdv.astype(compute_dtype)
    wdu_c = wdu.astype(compute_dtype)
    if I_pad != I:
        pad_i = I_pad - I
        wgu_c = jnp.pad(wgu_c, ((0, 0), (0, pad_i)))
        wuu_c = jnp.pad(wuu_c, ((0, 0), (0, pad_i)))
        wdv_c = jnp.pad(wdv_c, ((0, pad_i), (0, 0)))
        # padded columns give gate = up = 0 -> silu(0)*0 = 0 -> zero contribution.

    x2 = x.reshape(T, H).astype(compute_dtype)
    if T_pad != T:
        x2 = jnp.pad(x2, ((0, T_pad - T), (0, 0)))

    flops = 2 * T_pad * (2 * H * R + 2 * R * I_pad + I_pad * R + R * H)
    bytes_accessed = (T_pad * H * (x_bytes + out_bytes)
                      + (2 * H * R + R * H) * c_bytes
                      + n_tok * (2 * R * I_pad + I_pad * R) * c_bytes)
    cost = pl.CostEstimate(flops=int(flops), transcendentals=int(T_pad * I_pad),
                           bytes_accessed=int(bytes_accessed))

    est = _vmem_estimate(tm, ti, H, R, x_bytes, out_bytes, c_bytes)
    vmem_limit = int(max(32 << 20, min(budget, 2 * est)))

    fn = pl.pallas_call(
        _svd_mlp_kernel,
        out_shape=jax.ShapeDtypeStruct((T_pad, H), out_dtype),
        grid_spec=pltpu.PrefetchScalarGridSpec(
            num_scalar_prefetch=0,
            grid=(n_tok, n_int),
            in_specs=[
                pl.BlockSpec((tm, H), lambda i, j: (i, 0)),     # x token tile (bf16)
                pl.BlockSpec((H, 2 * R), lambda i, j: (0, 0)),  # [Wgv || Wuv] (constant block)
                pl.BlockSpec((R, ti), lambda i, j: (0, j)),     # Wgu tile
                pl.BlockSpec((R, ti), lambda i, j: (0, j)),     # Wuu tile
                pl.BlockSpec((ti, R), lambda i, j: (j, 0)),     # Wdv tile
                pl.BlockSpec((R, H), lambda i, j: (0, 0)),      # Wdu (constant block)
            ],
            out_specs=pl.BlockSpec((tm, H), lambda i, j: (i, 0)),
            scratch_shapes=[
                pltpu.VMEM((tm, R), jnp.float32),   # gate rank projection cache (f32)
                pltpu.VMEM((tm, R), jnp.float32),   # up   rank projection cache (f32)
                pltpu.VMEM((tm, R), jnp.float32),   # down-projection accumulator (f32)
            ],
        ),
        compiler_params=pltpu.CompilerParams(
            dimension_semantics=("parallel", "arbitrary"),
            vmem_limit_bytes=vmem_limit),
        cost_estimate=cost,
    )
    out = fn(x2, wguv_c, wgu_c, wuu_c, wdv_c, wdu_c)

    if T_pad != T:
        out = out[:T]
    return out.reshape(B, S, H)


def make_params(key, hidden_size, intermediate_size, lora_rank):
    """Synthetic weights, pre-transposed to [in, out] (nn.Linear stores [out, in])."""
    ks = jax.random.split(key, 6)
    scale = 0.05
    return {
        "gate_v": scale * jax.random.normal(ks[0], (hidden_size, lora_rank), jnp.float32),
        "gate_u": scale * jax.random.normal(ks[1], (lora_rank, intermediate_size), jnp.float32),
        "up_v":   scale * jax.random.normal(ks[2], (hidden_size, lora_rank), jnp.float32),
        "up_u":   scale * jax.random.normal(ks[3], (lora_rank, intermediate_size), jnp.float32),
        "down_v": scale * jax.random.normal(ks[4], (intermediate_size, lora_rank), jnp.float32),
        "down_u": scale * jax.random.normal(ks[5], (lora_rank, hidden_size), jnp.float32),
    }


def reference(x, p):
    """Pure-JAX f32 reference mirroring the PyTorch forward (tp == 1 branch)."""
    gate = (x @ p["gate_v"]) @ p["gate_u"]
    up = (x @ p["up_v"]) @ p["up_u"]
    inter = jax.nn.silu(gate) * up
    # down_v output has exactly lora_rank columns -> split + sum is the identity.
    return (inter @ p["down_v"]) @ p["down_u"]


if __name__ == "__main__":
    # Small but representative shapes: lane-aligned H/R, an intermediate size
    # (640) that is NOT a multiple of the 256 tile (exercises zero-padding),
    # and a token count (224) that needs padding to the 128 token tile.
    batch, seq = 2, 112
    hidden_size, intermediate_size, lora_rank = 256, 640, 128

    key = jax.random.PRNGKey(0)
    kx, kp = jax.random.split(key)
    x = jax.random.normal(kx, (batch, seq, hidden_size), jnp.float32)
    params = make_params(kp, hidden_size, intermediate_size, lora_rank)

    # Small tiles here so the test covers multiple token AND intermediate tiles
    # (init / accumulate / finalize paths); production defaults are much larger.
    out = svd_deepseek_mlp(x, params, token_tile=128, inter_tile=256)
    out = jax.block_until_ready(out)

    ref = reference(x, params)
    assert out.shape == (batch, seq, hidden_size)
    # bf16 MXU operands / bf16 activation math with f32 accumulation vs pure-f32 reference.
    assert jnp.allclose(out, ref, atol=2e-2, rtol=2e-2), "mismatch vs reference"

    print("KERNEL_OK")
</pallas_src>

<mosaic_0001>
module attributes {stable_mosaic.version = 11 : i64} {
  func.func @_svd_mlp_kernel(%arg0: i32, %arg1: i32, %arg2: memref<128x256xbf16, #tpu.memory_space<vmem>>, %arg3: memref<256x256xbf16, #tpu.memory_space<vmem>>, %arg4: memref<128x256xbf16, #tpu.memory_space<vmem>>, %arg5: memref<128x256xbf16, #tpu.memory_space<vmem>>, %arg6: memref<256x128xbf16, #tpu.memory_space<vmem>>, %arg7: memref<128x256xbf16, #tpu.memory_space<vmem>>, %arg8: memref<128x256xf32, #tpu.memory_space<vmem>>, %arg9: memref<128x128xf32, #tpu.memory_space<vmem>>, %arg10: memref<128x128xf32, #tpu.memory_space<vmem>>, %arg11: memref<128x128xf32, #tpu.memory_space<vmem>>) attributes {dimension_semantics = [#tpu.dimension_semantics<parallel>, #tpu.dimension_semantics<arbitrary>], iteration_bounds = array<i64: 2, 3>, scalar_prefetch = 0 : i64, scratch_operands = 3 : i64, tpu.core_type = #tpu.core_type<tc>, window_params = [{transform_indices = @transform_0, window_bounds = array<i64: 128, 256>}, {pipeline_mode = #tpu.pipeline_mode<synchronous>, transform_indices = @transform_1, window_bounds = array<i64: 256, 256>}, {transform_indices = @transform_2, window_bounds = array<i64: 128, 256>}, {transform_indices = @transform_3, window_bounds = array<i64: 128, 256>}, {transform_indices = @transform_4, window_bounds = array<i64: 256, 128>}, {pipeline_mode = #tpu.pipeline_mode<synchronous>, transform_indices = @transform_5, window_bounds = array<i64: 128, 256>}, {transform_indices = @transform_6, window_bounds = array<i64: 128, 256>}]} {
    %c0_i32 = arith.constant 0 : i32
    %0 = arith.cmpi eq, %arg1, %c0_i32 : i32
    %1 = arith.extui %0 : i1 to i32
    %c0_i32_0 = arith.constant 0 : i32
    %2 = arith.cmpi ne, %1, %c0_i32_0 : i32
    scf.if %2 {
      %c0_18 = arith.constant 0 : index
      %c0_19 = arith.constant 0 : index
      %27 = vector.load %arg2[%c0_18, %c0_19] : memref<128x256xbf16, #tpu.memory_space<vmem>>, vector<128x256xbf16>
      %c0_20 = arith.constant 0 : index
      %c0_21 = arith.constant 0 : index
      %28 = vector.load %arg3[%c0_20, %c0_21] : memref<256x256xbf16, #tpu.memory_space<vmem>>, vector<256x256xbf16>
      %cst_22 = arith.constant dense<0.000000e+00> : vector<128x256xf32>
      %29 = tpu.matmul %27, %28, %cst_22 {dimension_numbers = #tpu.dot_dimension_numbers<[1], [0], [0], [1], [0, 0, 1, 1], [], []>} : vector<128x256xbf16>, vector<256x256xbf16>, vector<128x256xf32> -> vector<128x256xf32>
      %30 = vector.extract_strided_slice %29 {offsets = [0, 0], sizes = [128, 128], strides = [1, 1]} : vector<128x256xf32> to vector<128x128xf32>
      %c0_23 = arith.constant 0 : index
      %c0_24 = arith.constant 0 : index
      %31 = vector.load %arg9[%c0_23, %c0_24] : memref<128x128xf32, #tpu.memory_space<vmem>>, vector<128x128xf32>
      tpu.vector_store %arg9[%c0_23, %c0_24], %30 {strides = array<i32>} : memref<128x128xf32, #tpu.memory_space<vmem>>, vector<128x128xf32>,
      %32 = vector.extract_strided_slice %29 {offsets = [0, 128], sizes = [128, 128], strides = [1, 1]} : vector<128x256xf32> to vector<128x128xf32>
      %c0_25 = arith.constant 0 : index
      %c0_26 = arith.constant 0 : index
      %33 = vector.load %arg10[%c0_25, %c0_26] : memref<128x128xf32, #tpu.memory_space<vmem>>, vector<128x128xf32>
      tpu.vector_store %arg10[%c0_25, %c0_26], %32 {strides = array<i32>} : memref<128x128xf32, #tpu.memory_space<vmem>>, vector<128x128xf32>,
      %cst_27 = arith.constant 0.000000e+00 : f32
      %34 = vector.broadcast %cst_27 : f32 to vector<128x128xf32>
      %c0_28 = arith.constant 0 : index
      %c0_29 = arith.constant 0 : index
      %35 = vector.load %arg11[%c0_28, %c0_29] : memref<128x128xf32, #tpu.memory_space<vmem>>, vector<128x128xf32>
      tpu.vector_store %arg11[%c0_28, %c0_29], %34 {strides = array<i32>} : memref<128x128xf32, #tpu.memory_space<vmem>>, vector<128x128xf32>,
    } else {
    }
    %c0 = arith.constant 0 : index
    %c0_1 = arith.constant 0 : index
    %3 = vector.load %arg9[%c0, %c0_1] : memref<128x128xf32, #tpu.memory_space<vmem>>, vector<128x128xf32>
    %4 = arith.truncf %3 : vector<128x128xf32> to vector<128x128xbf16>
    %c0_2 = arith.constant 0 : index
    %c0_3 = arith.constant 0 : index
    %5 = vector.load %arg4[%c0_2, %c0_3] : memref<128x256xbf16, #tpu.memory_space<vmem>>, vector<128x256xbf16>
    %cst = arith.constant dense<0.000000e+00> : vector<128x256xf32>
    %6 = tpu.matmul %4, %5, %cst {dimension_numbers = #tpu.dot_dimension_numbers<[1], [0], [0], [1], [0, 0, 1, 1], [], []>} : vector<128x128xbf16>, vector<128x256xbf16>, vector<128x256xf32> -> vector<128x256xf32>
    %7 = arith.truncf %6 : vector<128x256xf32> to vector<128x256xbf16>
    %c0_4 = arith.constant 0 : index
    %c0_5 = arith.constant 0 : index
    %8 = vector.load %arg10[%c0_4, %c0_5] : memref<128x128xf32, #tpu.memory_space<vmem>>, vector<128x128xf32>
    %9 = arith.truncf %8 : vector<128x128xf32> to vector<128x128xbf16>
    %c0_6 = arith.constant 0 : index
    %c0_7 = arith.constant 0 : index
    %10 = vector.load %arg5[%c0_6, %c0_7] : memref<128x256xbf16, #tpu.memory_space<vmem>>, vector<128x256xbf16>
    %cst_8 = arith.constant dense<0.000000e+00> : vector<128x256xf32>
    %11 = tpu.matmul %9, %10, %cst_8 {dimension_numbers = #tpu.dot_dimension_numbers<[1], [0], [0], [1], [0, 0, 1, 1], [], []>} : vector<128x128xbf16>, vector<128x256xbf16>, vector<128x256xf32> -> vector<128x256xf32>
    %12 = arith.truncf %11 : vector<128x256xf32> to vector<128x256xbf16>
    %cst_9 = arith.constant 5.000000e-01 : bf16
    %13 = vector.broadcast %cst_9 : bf16 to vector<128x256xbf16>
    %14 = arith.mulf %7, %13 : vector<128x256xbf16>
    %15 = math.tanh %14 : vector<128x256xbf16>
    %16 = arith.mulf %14, %15 : vector<128x256xbf16>
    %17 = arith.addf %14, %16 : vector<128x256xbf16>
    %18 = arith.mulf %17, %12 : vector<128x256xbf16>
    %c0_10 = arith.constant 0 : index
    %c0_11 = arith.constant 0 : index
    %19 = vector.load %arg11[%c0_10, %c0_11] : memref<128x128xf32, #tpu.memory_space<vmem>>, vector<128x128xf32>
    %c0_12 = arith.constant 0 : index
    %c0_13 = arith.constant 0 : index
    %20 = vector.load %arg6[%c0_12, %c0_13] : memref<256x128xbf16, #tpu.memory_space<vmem>>, vector<256x128xbf16>
    %cst_14 = arith.constant dense<0.000000e+00> : vector<128x128xf32>
    %21 = tpu.matmul %18, %20, %cst_14 {dimension_numbers = #tpu.dot_dimension_numbers<[1], [0], [0], [1], [0, 0, 1, 1], [], []>} : vector<128x256xbf16>, vector<256x128xbf16>, vector<128x128xf32> -> vector<128x128xf32>
    %22 = arith.addf %19, %21 : vector<128x128xf32>
    %c0_15 = arith.constant 0 : index
    %c0_16 = arith.constant 0 : index
    %23 = vector.load %arg11[%c0_15, %c0_16] : memref<128x128xf32, #tpu.memory_space<vmem>>, vector<128x128xf32>
    tpu.vector_store %arg11[%c0_15, %c0_16], %22 {strides = array<i32>} : memref<128x128xf32, #tpu.memory_space<vmem>>, vector<128x128xf32>,
    %c2_i32 = arith.constant 2 : i32
    %24 = arith.cmpi eq, %arg1, %c2_i32 : i32
    %25 = arith.extui %24 : i1 to i32
    %c0_i32_17 = arith.constant 0 : i32
    %26 = arith.cmpi ne, %25, %c0_i32_17 : i32
    scf.if %26 {
      %c0_18 = arith.constant 0 : index
      %c0_19 = arith.constant 0 : index
      %27 = vector.load %arg11[%c0_18, %c0_19] : memref<128x128xf32, #tpu.memory_space<vmem>>, vector<128x128xf32>
      %28 = arith.truncf %27 : vector<128x128xf32> to vector<128x128xbf16>
      %c0_20 = arith.constant 0 : index
      %c0_21 = arith.constant 0 : index
      %29 = vector.load %arg7[%c0_20, %c0_21] : memref<128x256xbf16, #tpu.memory_space<vmem>>, vector<128x256xbf16>
      %cst_22 = arith.constant dense<0.000000e+00> : vector<128x256xf32>
      %30 = tpu.matmul %28, %29, %cst_22 {dimension_numbers = #tpu.dot_dimension_numbers<[1], [0], [0], [1], [0, 0, 1, 1], [], []>} : vector<128x128xbf16>, vector<128x256xbf16>, vector<128x256xf32> -> vector<128x256xf32>
      %c0_23 = arith.constant 0 : index
      %c0_24 = arith.constant 0 : index
      %31 = vector.load %arg8[%c0_23, %c0_24] : memref<128x256xf32, #tpu.memory_space<vmem>>, vector<128x256xf32>
      tpu.vector_store %arg8[%c0_23, %c0_24], %30 {strides = array<i32>} : memref<128x256xf32, #tpu.memory_space<vmem>>, vector<128x256xf32>,
    } else {
    }
    return
  }
  func.func @transform_0(%arg0: i32, %arg1: i32) -> (i32, i32) {
    %c0_i32 = arith.constant 0 : i32
    %c0_i32_0 = arith.constant 0 : i32
    return %arg0, %c0_i32 : i32, i32
  }
  func.func @transform_1(%arg0: i32, %arg1: i32) -> (i32, i32) {
    %c0_i32 = arith.constant 0 : i32
    %c0_i32_0 = arith.constant 0 : i32
    %c0_i32_1 = arith.constant 0 : i32
    return %c0_i32, %c0_i32_0 : i32, i32
  }
  func.func @transform_2(%arg0: i32, %arg1: i32) -> (i32, i32) {
    %c0_i32 = arith.constant 0 : i32
    %c0_i32_0 = arith.constant 0 : i32
    return %c0_i32, %arg1 : i32, i32
  }
  func.func @transform_3(%arg0: i32, %arg1: i32) -> (i32, i32) {
    %c0_i32 = arith.constant 0 : i32
    %c0_i32_0 = arith.constant 0 : i32
    return %c0_i32, %arg1 : i32, i32
  }
  func.func @transform_4(%arg0: i32, %arg1: i32) -> (i32, i32) {
    %c0_i32 = arith.constant 0 : i32
    %c0_i32_0 = arith.constant 0 : i32
    return %arg1, %c0_i32 : i32, i32
  }
  func.func @transform_5(%arg0: i32, %arg1: i32) -> (i32, i32) {
    %c0_i32 = arith.constant 0 : i32
    %c0_i32_0 = arith.constant 0 : i32
    %c0_i32_1 = arith.constant 0 : i32
    return %c0_i32, %c0_i32_0 : i32, i32
  }
  func.func @transform_6(%arg0: i32, %arg1: i32) -> (i32, i32) {
    %c0_i32 = arith.constant 0 : i32
    %c0_i32_0 = arith.constant 0 : i32
    return %arg0, %c0_i32 : i32, i32
  }
}

</mosaic_0001>

<llo_original>
// kernel: tpu_custom_call.1
$region0: #{tpu_custom_call.1}
  #allocation0 [shape = 'u32[]', space=smem, size = 0x4, offset = 0x4, fixed_abs, tag = 'smem constant byte address 0x4 - core index']
  #allocation1 [shape = 'u32[144,128]{1,0:T(1,128)}', space=vmem, size = 0x12000, scoped, tag = 'internal scratch']
  #allocation2 [shape = 'f32[128,128]{1,0:T(8,128)}', space=vmem, size = 0x10000, scoped, tag = 'scratch operand']
  #allocation3 [shape = 'f32[128,128]{1,0:T(8,128)}', space=vmem, size = 0x10000, scoped, tag = 'scratch operand']
  #allocation4 [shape = 'f32[128,128]{1,0:T(8,128)}', space=vmem, size = 0x10000, scoped, tag = 'scratch operand']
  %s0 = inlined_call_operand.hbm [shape: bf16[256,256], index: 0, kind: input, shape index: {}]
  %s1 = inlined_call_operand.hbm [shape: bf16[256,256], index: 1, kind: input, shape index: {}]
  %s2 = inlined_call_operand.hbm [shape: bf16[128,768], index: 2, kind: input, shape index: {}]
  %s3 = inlined_call_operand.hbm [shape: bf16[128,768], index: 3, kind: input, shape index: {}]
  %s4 = inlined_call_operand.hbm [shape: bf16[768,128], index: 4, kind: input, shape index: {}]
  %s5 = inlined_call_operand.hbm [shape: bf16[128,256], index: 5, kind: input, shape index: {}]
  %s6 = inlined_call_operand.hbm [shape: f32[256,256], index: 6, kind: output, shape index: {}]
  %s7 = sld [smem:[#allocation0]]
  $region89: #{tpu_custom_call.1} parent=0
    _
  %s9 = ssub.s32 1, %s7
  %s10 = scalar_select 0, %s9, %s7
  $region1: #{tpu_custom_call.1} parent=0
    #allocation5 [shape = 'u8[131072]{0}', space=vmem, size = 0x20000, scoped, tag = 'input window, operand 0']
    #allocation6 [shape = 's32[2]{0}', space=sflag, size = 0x8, scoped, tag = 'scoped memory for tpu_custom_call.1']
    #allocation7 [shape = 's32[2]{0}', space=sflag, size = 0x8, scoped, tag = 'scoped memory for tpu_custom_call.1']
    #allocation8 [shape = 'u8[131072]{0}', space=vmem, size = 0x20000, scoped, tag = 'input window, operand 1, single buffered']
    #allocation9 [shape = 's32[1]{0}', space=sflag, size = 0x4, scoped, tag = 'scoped memory for tpu_custom_call.1']
    #allocation10 [shape = 'u8[131072]{0}', space=vmem, size = 0x20000, scoped, tag = 'input window, operand 2']
    #allocation11 [shape = 'u8[131072]{0}', space=vmem, size = 0x20000, scoped, tag = 'input window, operand 3']
    #allocation12 [shape = 'u8[131072]{0}', space=vmem, size = 0x20000, scoped, tag = 'input window, operand 4']
    #allocation13 [shape = 'u8[65536]{0}', space=vmem, size = 0x10000, scoped, tag = 'input window, operand 5, single buffered']
    #allocation14 [shape = 'u8[262144]{0}', space=vmem, size = 0x40000, scoped, tag = 'output window, operand 0']
    %11 = vsyncpa [#allocation6], 0
    %s12 = scalar_lea.sflag [#allocation6], 1
    %13 = vsyncpa %s12, 0
    %14 = vsyncpa [#allocation9], 0
    %15 = vsyncpa [#allocation7], 0
    %s16 = scalar_lea.sflag [#allocation7], 1
    %17 = vsyncpa %s16, 0
    loop: start=0, step=1, limit=8
    $region2: #{tpu_custom_call.1} parent=1 // loop_pre_header
      _
    $region3: #{tpu_custom_call.1} parent=1 // loop_header
      %s19 = sphi 0, %s23
      %p20 = scmp.ge.s32.totalorder %s19, 8
      %s26 = sphi 0, %s38
      %s27 = sphi 0, %s34
      %s28 = sphi 0, %s26
      %s29 = sphi 0, %s27
      %s30 = sphi 0, %s28
      %s31 = sphi 0, %s29
      %s41 = sphi 0, %s43
      %s44 = sphi 0, %s41
      %s45 = sphi 0, %s44
      %s61 = sphi 0, %s45
      %s65 = sphi 0, %s65
      %s67 = sphi 0, %s65
      %s68 = sphi 0, %s67
      %s82 = sphi 0, %s68
      %s88 = sphi 0, %s90
      %s91 = sphi 0, %s88
      %s92 = sphi 0, %s91
      %s108 = sphi 0, %s92
      %s114 = sphi 0, %s116
      %s117 = sphi 0, %s114
      %s118 = sphi 0, %s117
      %s134 = sphi 0, %s118
      %s140 = sphi 0, %s142
      %s143 = sphi 0, %s140
      %s144 = sphi 0, %s143
      %s160 = sphi 0, %s144
      %s164 = sphi 0, %s164
      %s166 = sphi 0, %s164
      %s167 = sphi 0, %s166
      %s181 = sphi 0, %s167
      %s187 = sphi 0, %s189
      %s190 = sphi 0, %s187
      %s191 = sphi 0, %s190
      %s207 = sphi 0, %s191
    $region4: #{tpu_custom_call.1} parent=1 // loop_header_branch
      %22 = sbr.rel (%p20) target = $region8
    $region5: #{tpu_custom_call.1} parent=1 // loop_body
      %s24 = ssub.s32 %s19, 1
      %s25 = ssub.s32 %s19, 2
      %s32 = sadd.s32 1, %s27
      %p33 = scmp.ge.s32.totalorder %s32, 3
      %s34 = scalar_select %p33, 0, %s32
      %s35 = sadd.s32 1, %s26
      %s36 = scalar_select %p33, %s35, %s26
      %p37 = scmp.ge.s32.totalorder %s36, 2
      %s38 = scalar_select %p37, 0, %s36
      %s39 = ssub.s32 %s26, %s38
      %p40 = scmp.eq.s32.totalorder %s39, 0
      %s42 = sadd.s32 %s41, 1
      %s43 = scalar_select %p40, %s41, %s42
      %p46 = pneg %p40
      %p47 = scmp.eq.s32.totalorder %s19, 5
      %p48 = por %p46, %p47
      %p49 = scmp.ne.s32.totalorder %s41, %s44
      %p50 = scmp.eq.s32.totalorder %s19, 0
      %p51 = por %p49, %p50
      %p52 = scmp.ne.s32.totalorder %s41, %s44
      %p53 = scmp.eq.s32.totalorder %s24, 5
      %p54 = por %p52, %p53
      %p55 = scmp.ne.s32.totalorder %s44, %s45
      %p56 = scmp.eq.s32.totalorder %s24, 0
      %p57 = por %p55, %p56
      %p58 = scmp.ne.s32.totalorder %s44, %s45
      %p59 = scmp.eq.s32.totalorder %s25, 5
      %p60 = por %p58, %p59
      %p62 = scmp.ne.s32.totalorder %s45, %s61
      %p63 = scmp.eq.s32.totalorder %s25, 0
      %p64 = por %p62, %p63
      %s66 = sadd.s32 %s65, 1
      %p69 = scmp.eq.s32.totalorder %s19, 5
      %p70 = scmp.ne.s32.totalorder %s65, %s67
      %p71 = scmp.eq.s32.totalorder %s19, 0
      %p72 = por %p70, %p71
      %p73 = scmp.ne.s32.totalorder %s65, %s67
      %p74 = scmp.eq.s32.totalorder %s24, 5
      %p75 = por %p73, %p74
      %p76 = scmp.ne.s32.totalorder %s67, %s68
      %p77 = scmp.eq.s32.totalorder %s24, 0
      %p78 = por %p76, %p77
      %p79 = scmp.ne.s32.totalorder %s67, %s68
      %p80 = scmp.eq.s32.totalorder %s25, 5
      %p81 = por %p79, %p80
      %p83 = scmp.ne.s32.totalorder %s68, %s82
      %p84 = scmp.eq.s32.totalorder %s25, 0
      %p85 = por %p83, %p84
      %s86 = ssub.s32 %s27, %s34
      %p87 = scmp.eq.s32.totalorder %s86, 0
      %s89 = sadd.s32 %s88, 1
      %s90 = scalar_select %p87, %s88, %s89
      %p93 = pneg %p87
      %p94 = scmp.eq.s32.totalorder %s19, 5
      %p95 = por %p93, %p94
      %p96 = scmp.ne.s32.totalorder %s88, %s91
      %p97 = scmp.eq.s32.totalorder %s19, 0
      %p98 = por %p96, %p97
      %p99 = scmp.ne.s32.totalorder %s88, %s91
      %p100 = scmp.eq.s32.totalorder %s24, 5
      %p101 = por %p99, %p100
      %p102 = scmp.ne.s32.totalorder %s91, %s92
      %p103 = scmp.eq.s32.totalorder %s24, 0
      %p104 = por %p102, %p103
      %p105 = scmp.ne.s32.totalorder %s91, %s92
      %p106 = scmp.eq.s32.totalorder %s25, 5
      %p107 = por %p105, %p106
      %p109 = scmp.ne.s32.totalorder %s92, %s108
      %p110 = scmp.eq.s32.totalorder %s25, 0
      %p111 = por %p109, %p110
      %s112 = ssub.s32 %s27, %s34
      %p113 = scmp.eq.s32.totalorder %s112, 0
      %s115 = sadd.s32 %s114, 1
      %s116 = scalar_select %p113, %s114, %s115
      %p119 = pneg %p113
      %p120 = scmp.eq.s32.totalorder %s19, 5
      %p121 = por %p119, %p120
      %p122 = scmp.ne.s32.totalorder %s114, %s117
      %p123 = scmp.eq.s32.totalorder %s19, 0
      %p124 = por %p122, %p123
      %p125 = scmp.ne.s32.totalorder %s114, %s117
      %p126 = scmp.eq.s32.totalorder %s24, 5
      %p127 = por %p125, %p126
      %p128 = scmp.ne.s32.totalorder %s117, %s118
      %p129 = scmp.eq.s32.totalorder %s24, 0
      %p130 = por %p128, %p129
      %p131 = scmp.ne.s32.totalorder %s117, %s118
      %p132 = scmp.eq.s32.totalorder %s25, 5
      %p133 = por %p131, %p132
      %p135 = scmp.ne.s32.totalorder %s118, %s134
      %p136 = scmp.eq.s32.totalorder %s25, 0
      %p137 = por %p135, %p136
      %s138 = ssub.s32 %s27, %s34
      %p139 = scmp.eq.s32.totalorder %s138, 0
      %s141 = sadd.s32 %s140, 1
      %s142 = scalar_select %p139, %s140, %s141
      %p145 = pneg %p139
      %p146 = scmp.eq.s32.totalorder %s19, 5
      %p147 = por %p145, %p146
      %p148 = scmp.ne.s32.totalorder %s140, %s143
      %p149 = scmp.eq.s32.totalorder %s19, 0
      %p150 = por %p148, %p149
      %p151 = scmp.ne.s32.totalorder %s140, %s143
      %p152 = scmp.eq.s32.totalorder %s24, 5
      %p153 = por %p151, %p152
      %p154 = scmp.ne.s32.totalorder %s143, %s144
      %p155 = scmp.eq.s32.totalorder %s24, 0
      %p156 = por %p154, %p155
      %p157 = scmp.ne.s32.totalorder %s143, %s144
      %p158 = scmp.eq.s32.totalorder %s25, 5
      %p159 = por %p157, %p158
      %p161 = scmp.ne.s32.totalorder %s144, %s160
      %p162 = scmp.eq.s32.totalorder %s25, 0
      %p163 = por %p161, %p162
      %s165 = sadd.s32 %s164, 1
      %p168 = scmp.eq.s32.totalorder %s19, 5
      %p169 = scmp.ne.s32.totalorder %s164, %s166
      %p170 = scmp.eq.s32.totalorder %s19, 0
      %p171 = por %p169, %p170
      %p172 = scmp.ne.s32.totalorder %s164, %s166
      %p173 = scmp.eq.s32.totalorder %s24, 5
      %p174 = por %p172, %p173
      %p175 = scmp.ne.s32.totalorder %s166, %s167
      %p176 = scmp.eq.s32.totalorder %s24, 0
      %p177 = por %p175, %p176
      %p178 = scmp.ne.s32.totalorder %s166, %s167
      %p179 = scmp.eq.s32.totalorder %s25, 5
      %p180 = por %p178, %p179
      %p182 = scmp.ne.s32.totalorder %s167, %s181
      %p183 = scmp.eq.s32.totalorder %s25, 0
      %p184 = por %p182, %p183
      %s185 = ssub.s32 %s26, %s38
      %p186 = scmp.eq.s32.totalorder %s185, 0
      %s188 = sadd.s32 %s187, 1
      %s189 = scalar_select %p186, %s187, %s188
      %p192 = pneg %p186
      %p193 = scmp.eq.s32.totalorder %s19, 5
      %p194 = por %p192, %p193
      %p195 = scmp.ne.s32.totalorder %s187, %s190
      %p196 = scmp.eq.s32.totalorder %s19, 0
      %p197 = por %p195, %p196
      %p198 = scmp.ne.s32.totalorder %s187, %s190
      %p199 = scmp.eq.s32.totalorder %s24, 5
      %p200 = por %p198, %p199
      %p201 = scmp.ne.s32.totalorder %s190, %s191
      %p202 = scmp.eq.s32.totalorder %s24, 0
      %p203 = por %p201, %p202
      %p204 = scmp.ne.s32.totalorder %s190, %s191
      %p205 = scmp.eq.s32.totalorder %s25, 5
      %p206 = por %p204, %p205
      %p208 = scmp.ne.s32.totalorder %s191, %s207
      %p209 = scmp.eq.s32.totalorder %s25, 0
      %p210 = por %p208, %p209
      %p211 = scmp.le.s32.totalorder 1, %s19
      %p212 = scmp.lt.s32.totalorder %s19, 7
      %p213 = pnand %p211, %p212
      %p214 = pneg %p213
      // Predicated region
      $region9: #{tpu_custom_call.1} parent=5 // pred_check
        _
      $region10: #{tpu_custom_call.1} parent=5 // pred_check_branch
        %216 = sbr.rel (%p213) target = $region12
      $region11: #{tpu_custom_call.1} parent=5 // pred_region
        %s217 = ssub.s32 %s19, 1
        // Predicated region
        $region13: #{tpu_custom_call.1} parent=11 // pred_check
          %p218 = pneg %p78
        $region14: #{tpu_custom_call.1} parent=11 // pred_check_branch
          %220 = sbr.rel (%p218) target = $region16
        $region15: #{tpu_custom_call.1} parent=11 // pred_region
          %s222 = ssub.s32 4096, 4096
          %223 = vsyncadd [#allocation9], %s222
          %s224 = sshll.u32 [#allocation8], 4
          %s225 = int_to_ptr.vmem [resolvable:$true] %s224
          %230 = dma.hbm_to_vmem [thread:$0]  %s1, 4096, %s225, [#allocation9], 128, 128, 8
        $region16: #{tpu_custom_call.1} parent=11 // pred_fallthru
          _
        // Predicated region
        $region17: #{tpu_custom_call.1} parent=11 // pred_check
          %p231 = pneg %p177
        $region18: #{tpu_custom_call.1} parent=11 // pred_check_branch
          %233 = sbr.rel (%p231) target = $region20
        $region19: #{tpu_custom_call.1} parent=11 // pred_region
          %s235 = ssub.s32 2048, 2048
          %236 = vsyncadd [#allocation9], %s235
          %s237 = sshll.u32 [#allocation13], 4
          %s238 = int_to_ptr.vmem [resolvable:$true] %s237
          %243 = dma.hbm_to_vmem [thread:$0]  %s5, 2048, %s238, [#allocation9], 128, 128, 8
        $region20: #{tpu_custom_call.1} parent=11 // pred_fallthru
          _
      $region12: #{tpu_custom_call.1} parent=5 // pred_fallthru
        _
      %p244 = scmp.lt.s32.totalorder %s19, 6
      // Predicated region
      $region21: #{tpu_custom_call.1} parent=5 // pred_check
        %p245 = pneg %p244
      $region22: #{tpu_custom_call.1} parent=5 // pred_check_branch
        %247 = sbr.rel (%p245) target = $region24
      $region23: #{tpu_custom_call.1} parent=5 // pred_region
        // Predicated region
        $region25: #{tpu_custom_call.1} parent=23 // pred_check
          %p248 = pneg %p51
        $region26: #{tpu_custom_call.1} parent=23 // pred_check_branch
          %250 = sbr.rel (%p248) target = $region28
        $region27: #{tpu_custom_call.1} parent=23 // pred_region
          %s251 = sand.u32 %s19, 1
          %s252 = scalar_lea.sflag [#allocation6], %s251
          %s253 = sand.u32 %s41, 1
          %s254 = smul.addr %s253, 128
          %s255 = scalar_lea.vmem [#allocation5], %s254
          %s256 = smul.u32 16, %s26
          %s258 = ssub.s32 2048, 2048
          %259 = vsyncadd %s252, %s258
          %s260 = smul.addr %s256, 2
          %s261 = smul.addr %s260, 64
          %s262 = scalar_lea.hbm %s0, %s261
          %s263 = sshll.u32 %s255, 4
          %s264 = int_to_ptr.vmem [resolvable:$true] %s263
          %269 = dma.hbm_to_vmem [thread:$0]  %s262, 2048, %s264, %s252, 128, 128, 8
        $region28: #{tpu_custom_call.1} parent=23 // pred_fallthru
          _
        // Predicated region
        $region29: #{tpu_custom_call.1} parent=23 // pred_check
          %p270 = pneg %p98
        $region30: #{tpu_custom_call.1} parent=23 // pred_check_branch
          %272 = sbr.rel (%p270) target = $region32
        $region31: #{tpu_custom_call.1} parent=23 // pred_region
          %s273 = sand.u32 %s19, 1
          %s274 = scalar_lea.sflag [#allocation6], %s273
          %s275 = sand.u32 %s88, 1
          %s276 = smul.addr %s275, 128
          %s277 = scalar_lea.vmem [#allocation10], %s276
          %s278 = smul.u32 2, %s27
          %s280 = ssub.s32 2048, 2048
          %281 = vsyncadd %s274, %s280
          %s282 = smul.addr %s278, 64
          %s283 = scalar_lea.hbm %s2, %s282
          %s284 = sshll.u32 %s277, 4
          %s285 = int_to_ptr.vmem [resolvable:$true] %s284
          %290 = dma.hbm_to_vmem [thread:$0]  %s283, 2048, %s285, %s274, 384, 128, 8
        $region32: #{tpu_custom_call.1} parent=23 // pred_fallthru
          _
        // Predicated region
        $region33: #{tpu_custom_call.1} parent=23 // pred_check
          %p291 = pneg %p124
        $region34: #{tpu_custom_call.1} parent=23 // pred_check_branch
          %293 = sbr.rel (%p291) target = $region36
        $region35: #{tpu_custom_call.1} parent=23 // pred_region
          %s294 = sand.u32 %s19, 1
          %s295 = scalar_lea.sflag [#allocation6], %s294
          %s296 = sand.u32 %s114, 1
          %s297 = smul.addr %s296, 128
          %s298 = scalar_lea.vmem [#allocation11], %s297
          %s299 = smul.u32 2, %s27
          %s301 = ssub.s32 2048, 2048
          %302 = vsyncadd %s295, %s301
          %s303 = smul.addr %s299, 64
          %s304 = scalar_lea.hbm %s3, %s303
          %s305 = sshll.u32 %s298, 4
          %s306 = int_to_ptr.vmem [resolvable:$true] %s305
          %311 = dma.hbm_to_vmem [thread:$0]  %s304, 2048, %s306, %s295, 384, 128, 8
        $region36: #{tpu_custom_call.1} parent=23 // pred_fallthru
          _
        // Predicated region
        $region37: #{tpu_custom_call.1} parent=23 // pred_check
          %p312 = pneg %p150
        $region38: #{tpu_custom_call.1} parent=23 // pred_check_branch
          %314 = sbr.rel (%p312) target = $region40
        $region39: #{tpu_custom_call.1} parent=23 // pred_region
          %s315 = sand.u32 %s19, 1
          %s316 = scalar_lea.sflag [#allocation6], %s315
          %s317 = sand.u32 %s140, 1
          %s318 = smul.addr %s317, 128
          %s319 = scalar_lea.vmem [#allocation12], %s318
          %s320 = smul.u32 32, %s27
          %s322 = ssub.s32 2048, 2048
          %323 = vsyncadd %s316, %s322
          %s324 = smul.addr %s320, 64
          %s325 = scalar_lea.hbm %s4, %s324
          %s326 = sshll.u32 %s319, 4
          %s327 = int_to_ptr.vmem [resolvable:$true] %s326
          %332 = dma.hbm_to_vmem [thread:$0]  %s325, 2048, %s327, %s316, 64, 64, 4
        $region40: #{tpu_custom_call.1} parent=23 // pred_fallthru
          _
      $region24: #{tpu_custom_call.1} parent=5 // pred_fallthru
        _
      %p333 = scmp.le.s32.totalorder 1, %s19
      %p334 = scmp.lt.s32.totalorder %s19, 7
      %p335 = pnand %p333, %p334
      %p336 = pneg %p335
      // Predicated region
      $region41: #{tpu_custom_call.1} parent=5 // pred_check
        _
      $region42: #{tpu_custom_call.1} parent=5 // pred_check_branch
        %338 = sbr.rel (%p335) target = $region44
      $region43: #{tpu_custom_call.1} parent=5 // pred_region
        %s339 = ssub.s32 %s19, 1
        %s340 = sand.u32 %s24, 1
        %s341 = scalar_lea.sflag [#allocation6], %s340
        %s342 = sand.u32 %s44, 1
        %s343 = smul.addr %s342, 128
        %s344 = scalar_lea.vmem [#allocation5], %s343
        // Predicated region
        $region45: #{tpu_custom_call.1} parent=43 // pred_check
          %p345 = pneg %p57
        $region46: #{tpu_custom_call.1} parent=43 // pred_check_branch
          %347 = sbr.rel (%p345) target = $region48
        $region47: #{tpu_custom_call.1} parent=43 // pred_region
          %348 = dma.done %s341, 2048
        $region48: #{tpu_custom_call.1} parent=43 // pred_fallthru
          _
        // Predicated region
        $region49: #{tpu_custom_call.1} parent=43 // pred_check
          %p349 = pneg %p78
        $region50: #{tpu_custom_call.1} parent=43 // pred_check_branch
          %351 = sbr.rel (%p349) target = $region52
        $region51: #{tpu_custom_call.1} parent=43 // pred_region
          %352 = dma.done [#allocation9], 4096
        $region52: #{tpu_custom_call.1} parent=43 // pred_fallthru
          _
        %s353 = sand.u32 %s24, 1
        %s354 = scalar_lea.sflag [#allocation6], %s353
        %s355 = sand.u32 %s91, 1
        %s356 = smul.addr %s355, 128
        %s357 = scalar_lea.vmem [#allocation10], %s356
        // Predicated region
        $region53: #{tpu_custom_call.1} parent=43 // pred_check
          %p358 = pneg %p104
        $region54: #{tpu_custom_call.1} parent=43 // pred_check_branch
          %360 = sbr.rel (%p358) target = $region56
        $region55: #{tpu_custom_call.1} parent=43 // pred_region
          %361 = dma.done %s354, 2048
        $region56: #{tpu_custom_call.1} parent=43 // pred_fallthru
          _
        %s362 = sand.u32 %s24, 1
        %s363 = scalar_lea.sflag [#allocation6], %s362
        %s364 = sand.u32 %s117, 1
        %s365 = smul.addr %s364, 128
        %s366 = scalar_lea.vmem [#allocation11], %s365
        // Predicated region
        $region57: #{tpu_custom_call.1} parent=43 // pred_check
          %p367 = pneg %p130
        $region58: #{tpu_custom_call.1} parent=43 // pred_check_branch
          %369 = sbr.rel (%p367) target = $region60
        $region59: #{tpu_custom_call.1} parent=43 // pred_region
          %370 = dma.done %s363, 2048
        $region60: #{tpu_custom_call.1} parent=43 // pred_fallthru
          _
        %s371 = sand.u32 %s24, 1
        %s372 = scalar_lea.sflag [#allocation6], %s371
        %s373 = sand.u32 %s143, 1
        %s374 = smul.addr %s373, 128
        %s375 = scalar_lea.vmem [#allocation12], %s374
        // Predicated region
        $region61: #{tpu_custom_call.1} parent=43 // pred_check
          %p376 = pneg %p156
        $region62: #{tpu_custom_call.1} parent=43 // pred_check_branch
          %378 = sbr.rel (%p376) target = $region64
        $region63: #{tpu_custom_call.1} parent=43 // pred_region
          %379 = dma.done %s372, 2048
        $region64: #{tpu_custom_call.1} parent=43 // pred_fallthru
          _
        // Predicated region
        $region65: #{tpu_custom_call.1} parent=43 // pred_check
          %p380 = pneg %p177
        $region66: #{tpu_custom_call.1} parent=43 // pred_check_branch
          %382 = sbr.rel (%p380) target = $region68
        $region67: #{tpu_custom_call.1} parent=43 // pred_region
          %383 = dma.done [#allocation9], 2048
        $region68: #{tpu_custom_call.1} parent=43 // pred_fallthru
          _
        %s384 = sand.u32 %s24, 1
        %s385 = scalar_lea.sflag [#allocation6], %s384
        %s386 = sand.u32 %s44, 1
        %s387 = smul.addr %s386, 128
        %s388 = scalar_lea.vmem [#allocation5], %s387
        %p389 = pneg %p57
        %p390 = pneg %p54
        %p391 = pneg %p78
        %p392 = pneg %p75
        %s393 = sand.u32 %s24, 1
        %s394 = scalar_lea.sflag [#allocation6], %s393
        %s395 = sand.u32 %s91, 1
        %s396 = smul.addr %s395, 128
        %s397 = scalar_lea.vmem [#allocation10], %s396
        %p398 = pneg %p104
        %p399 = pneg %p101
        %s400 = sand.u32 %s24, 1
        %s401 = scalar_lea.sflag [#allocation6], %s400
        %s402 = sand.u32 %s117, 1
        %s403 = smul.addr %s402, 128
        %s404 = scalar_lea.vmem [#allocation11], %s403
        %p405 = pneg %p130
        %p406 = pneg %p127
        %s407 = sand.u32 %s24, 1
        %s408 = scalar_lea.sflag [#allocation6], %s407
        %s409 = sand.u32 %s143, 1
        %s410 = smul.addr %s409, 128
        %s411 = scalar_lea.vmem [#allocation12], %s410
        %p412 = pneg %p156
        %p413 = pneg %p153
        %p414 = pneg %p177
        %p415 = pneg %p174
        %p416 = pneg %p203
        %p417 = pneg %p200
        %s418 = sand.u32 %s190, 1
        %s419 = scalar_lea.sflag [#allocation7], %s418
        %s420 = sand.u32 %s190, 1
        %s421 = smul.addr %s420, 256
        %s422 = scalar_lea.vmem [#allocation14], %s421
        %s423 = smul.u32 16, %s28
        %s424 = smul.u32 2, %s29
        %s425 = smul.u32 2, %s29
        %s426 = smul.u32 32, %s29
        %s427 = smul.u32 16, %s28
        %p430 = scmp.eq.s32.totalorder %s29, 0
        // Predicated region
        $region69: #{tpu_custom_call.1} parent=43 // pred_check
          %p431 = pneg %p430
        $region70: #{tpu_custom_call.1} parent=43 // pred_check_branch
          %433 = sbr.rel (%p431) target = $region72
        $region71: #{tpu_custom_call.1} parent=43 // pred_region
          %v434 = vld [vmem:[%s344] sm:$0xff]
          %v435 = vld [vmem:[%s344 + $0x8] sm:$0xff]
          %v436 = vld [vmem:[%s344 + $0x10] sm:$0xff]
          %v437 = vld [vmem:[%s344 + $0x18] sm:$0xff]
          %v438 = vld [vmem:[%s344 + $0x20] sm:$0xff]
          %v439 = vld [vmem:[%s344 + $0x28] sm:$0xff]
          %v440 = vld [vmem:[%s344 + $0x30] sm:$0xff]
          %v441 = vld [vmem:[%s344 + $0x38] sm:$0xff]
          %v442 = vld [vmem:[%s344 + $0x40] sm:$0xff]
          %v443 = vld [vmem:[%s344 + $0x48] sm:$0xff]
          %v444 = vld [vmem:[%s344 + $0x50] sm:$0xff]
          %v445 = vld [vmem:[%s344 + $0x58] sm:$0xff]
          %v446 = vld [vmem:[%s344 + $0x60] sm:$0xff]
          %v447 = vld [vmem:[%s344 + $0x68] sm:$0xff]
          %v448 = vld [vmem:[%s344 + $0x70] sm:$0xff]
          %v449 = vld [vmem:[%s344 + $0x78] sm:$0xff]
          %v450 = vld [vmem:[#allocation8] sm:$0xff]
          %v451 = vld [vmem:[#allocation8 + $0x8] sm:$0xff]
          %v452 = vld [vmem:[#allocation8 + $0x10] sm:$0xff]
          %v453 = vld [vmem:[#allocation8 + $0x18] sm:$0xff]
          %v454 = vld [vmem:[#allocation8 + $0x20] sm:$0xff]
          %v455 = vld [vmem:[#allocation8 + $0x28] sm:$0xff]
          %v456 = vld [vmem:[#allocation8 + $0x30] sm:$0xff]
          %v457 = vld [vmem:[#allocation8 + $0x38] sm:$0xff]
          %v458 = vld [vmem:[#allocation8 + $0x40] sm:$0xff]
          %v459 = vld [vmem:[#allocation8 + $0x48] sm:$0xff]
          %v460 = vld [vmem:[#allocation8 + $0x50] sm:$0xff]
          %v461 = vld [vmem:[#allocation8 + $0x58] sm:$0xff]
          %v462 = vld [vmem:[#allocation8 + $0x60] sm:$0xff]
          %v463 = vld [vmem:[#allocation8 + $0x68] sm:$0xff]
          %v464 = vld [vmem:[#allocation8 + $0x70] sm:$0xff]
          %v465 = vld [vmem:[#allocation8 + $0x78] sm:$0xff]
          %v466 = vld [vmem:[#allocation8 + $0x80] sm:$0xff]
          %v467 = vld [vmem:[#allocation8 + $0x88] sm:$0xff]
          %v468 = vld [vmem:[#allocation8 + $0x90] sm:$0xff]
          %v469 = vld [vmem:[#allocation8 + $0x98] sm:$0xff]
          %v470 = vld [vmem:[#allocation8 + $0xa0] sm:$0xff]
          %v471 = vld [vmem:[#allocation8 + $0xa8] sm:$0xff]
          %v472 = vld [vmem:[#allocation8 + $0xb0] sm:$0xff]
          %v473 = vld [vmem:[#allocation8 + $0xb8] sm:$0xff]
          %v474 = vld [vmem:[#allocation8 + $0xc0] sm:$0xff]
          %v475 = vld [vmem:[#allocation8 + $0xc8] sm:$0xff]
          %v476 = vld [vmem:[#allocation8 + $0xd0] sm:$0xff]
          %v477 = vld [vmem:[#allocation8 + $0xd8] sm:$0xff]
          %v478 = vld [vmem:[#allocation8 + $0xe0] sm:$0xff]
          %v479 = vld [vmem:[#allocation8 + $0xe8] sm:$0xff]
          %v480 = vld [vmem:[#allocation8 + $0xf0] sm:$0xff]
          %v481 = vld [vmem:[#allocation8 + $0xf8] sm:$0xff]
          %v498 = vunpack.c.l.b16 %v434
          %v499 = vunpack.c.h.b16 %v434
          %v500 = vunpack.c.l.b16 %v435
          %v501 = vunpack.c.h.b16 %v435
          %v502 = vunpack.c.l.b16 %v436
          %v503 = vunpack.c.h.b16 %v436
          %v504 = vunpack.c.l.b16 %v437
          %v505 = vunpack.c.h.b16 %v437
          %v506 = vunpack.c.l.b16 %v438
          %v507 = vunpack.c.h.b16 %v438
          %v508 = vunpack.c.l.b16 %v439
          %v509 = vunpack.c.h.b16 %v439
          %v510 = vunpack.c.l.b16 %v440
          %v511 = vunpack.c.h.b16 %v440
          %v512 = vunpack.c.l.b16 %v441
          %v513 = vunpack.c.h.b16 %v441
          %v514 = vunpack.c.l.b16 %v442
          %v515 = vunpack.c.h.b16 %v442
          %v516 = vunpack.c.l.b16 %v443
          %v517 = vunpack.c.h.b16 %v443
          %v518 = vunpack.c.l.b16 %v444
          %v519 = vunpack.c.h.b16 %v444
          %v520 = vunpack.c.l.b16 %v445
          %v521 = vunpack.c.h.b16 %v445
          %v522 = vunpack.c.l.b16 %v446
          %v523 = vunpack.c.h.b16 %v446
          %v524 = vunpack.c.l.b16 %v447
          %v525 = vunpack.c.h.b16 %v447
          %v526 = vunpack.c.l.b16 %v448
          %v527 = vunpack.c.h.b16 %v448
          %v528 = vunpack.c.l.b16 %v449
          %v529 = vunpack.c.h.b16 %v449
          %v530 = vpack.c.b16 %v500, %v498
          %v531 = vpack.c.b16 %v501, %v499
          %v532 = vpack.c.b16 %v504, %v502
          %v533 = vpack.c.b16 %v505, %v503
          %v534 = vpack.c.b16 %v508, %v506
          %v535 = vpack.c.b16 %v509, %v507
          %v536 = vpack.c.b16 %v512, %v510
          %v537 = vpack.c.b16 %v513, %v511
          %v538 = vpack.c.b16 %v516, %v514
          %v539 = vpack.c.b16 %v517, %v515
          %v540 = vpack.c.b16 %v520, %v518
          %v541 = vpack.c.b16 %v521, %v519
          %v542 = vpack.c.b16 %v524, %v522
          %v543 = vpack.c.b16 %v525, %v523
          %v544 = vpack.c.b16 %v528, %v526
          %v545 = vpack.c.b16 %v529, %v527
          %v594 = vunpack.c.l.b16 %v450
          %v595 = vunpack.c.h.b16 %v450
          %v596 = vunpack.c.l.b16 %v451
          %v597 = vunpack.c.h.b16 %v451
          %v598 = vunpack.c.l.b16 %v452
          %v599 = vunpack.c.h.b16 %v452
          %v600 = vunpack.c.l.b16 %v453
          %v601 = vunpack.c.h.b16 %v453
          %v602 = vunpack.c.l.b16 %v454
          %v603 = vunpack.c.h.b16 %v454
          %v604 = vunpack.c.l.b16 %v455
          %v605 = vunpack.c.h.b16 %v455
          %v606 = vunpack.c.l.b16 %v456
          %v607 = vunpack.c.h.b16 %v456
          %v608 = vunpack.c.l.b16 %v457
          %v609 = vunpack.c.h.b16 %v457
          %v610 = vunpack.c.l.b16 %v458
          %v611 = vunpack.c.h.b16 %v458
          %v612 = vunpack.c.l.b16 %v459
          %v613 = vunpack.c.h.b16 %v459
          %v614 = vunpack.c.l.b16 %v460
          %v615 = vunpack.c.h.b16 %v460
          %v616 = vunpack.c.l.b16 %v461
          %v617 = vunpack.c.h.b16 %v461
          %v618 = vunpack.c.l.b16 %v462
          %v619 = vunpack.c.h.b16 %v462
          %v620 = vunpack.c.l.b16 %v463
          %v621 = vunpack.c.h.b16 %v463
          %v622 = vunpack.c.l.b16 %v464
          %v623 = vunpack.c.h.b16 %v464
          %v624 = vunpack.c.l.b16 %v465
          %v625 = vunpack.c.h.b16 %v465
          %v626 = vunpack.c.l.b16 %v466
          %v627 = vunpack.c.h.b16 %v466
          %v628 = vunpack.c.l.b16 %v467
          %v629 = vunpack.c.h.b16 %v467
          %v630 = vunpack.c.l.b16 %v468
          %v631 = vunpack.c.h.b16 %v468
          %v632 = vunpack.c.l.b16 %v469
          %v633 = vunpack.c.h.b16 %v469
          %v634 = vunpack.c.l.b16 %v470
          %v635 = vunpack.c.h.b16 %v470
          %v636 = vunpack.c.l.b16 %v471
          %v637 = vunpack.c.h.b16 %v471
          %v638 = vunpack.c.l.b16 %v472
          %v639 = vunpack.c.h.b16 %v472
          %v640 = vunpack.c.l.b16 %v473
          %v641 = vunpack.c.h.b16 %v473
          %v642 = vunpack.c.l.b16 %v474
          %v643 = vunpack.c.h.b16 %v474
          %v644 = vunpack.c.l.b16 %v475
          %v645 = vunpack.c.h.b16 %v475
          %v646 = vunpack.c.l.b16 %v476
          %v647 = vunpack.c.h.b16 %v476
          %v648 = vunpack.c.l.b16 %v477
          %v649 = vunpack.c.h.b16 %v477
          %v650 = vunpack.c.l.b16 %v478
          %v651 = vunpack.c.h.b16 %v478
          %v652 = vunpack.c.l.b16 %v479
          %v653 = vunpack.c.h.b16 %v479
          %v654 = vunpack.c.l.b16 %v480
          %v655 = vunpack.c.h.b16 %v480
          %v656 = vunpack.c.l.b16 %v481
          %v657 = vunpack.c.h.b16 %v481
          %v658 = vpack.c.b16 %v596, %v594
          %v659 = vpack.c.b16 %v597, %v595
          %v660 = vpack.c.b16 %v600, %v598
          %v661 = vpack.c.b16 %v601, %v599
          %v662 = vpack.c.b16 %v604, %v602
          %v663 = vpack.c.b16 %v605, %v603
          %v664 = vpack.c.b16 %v608, %v606
          %v665 = vpack.c.b16 %v609, %v607
          %v666 = vpack.c.b16 %v612, %v610
          %v667 = vpack.c.b16 %v613, %v611
          %v668 = vpack.c.b16 %v616, %v614
          %v669 = vpack.c.b16 %v617, %v615
          %v670 = vpack.c.b16 %v620, %v618
          %v671 = vpack.c.b16 %v621, %v619
          %v672 = vpack.c.b16 %v624, %v622
          %v673 = vpack.c.b16 %v625, %v623
          %v674 = vpack.c.b16 %v628, %v626
          %v675 = vpack.c.b16 %v629, %v627
          %v676 = vpack.c.b16 %v632, %v630
          %v677 = vpack.c.b16 %v633, %v631
          %v678 = vpack.c.b16 %v636, %v634
          %v679 = vpack.c.b16 %v637, %v635
          %v680 = vpack.c.b16 %v640, %v638
          %v681 = vpack.c.b16 %v641, %v639
          %v682 = vpack.c.b16 %v644, %v642
          %v683 = vpack.c.b16 %v645, %v643
          %v684 = vpack.c.b16 %v648, %v646
          %v685 = vpack.c.b16 %v649, %v647
          %v686 = vpack.c.b16 %v652, %v650
          %v687 = vpack.c.b16 %v653, %v651
          %v688 = vpack.c.b16 %v656, %v654
          %v689 = vpack.c.b16 %v657, %v655
          %722 = vmatprep.subr.bf16.mxu0 %v659
          %723 = vmatpush1.bf16.msra.mxu0 %v658
          %724 = vmatprep.subr.bf16.mxu0 %v661
          %725 = vmatpush1.bf16.msra.mxu0 %v660
          %726 = vmatprep.subr.bf16.mxu0 %v663
          %727 = vmatpush1.bf16.msra.mxu0 %v662
          %728 = vmatprep.subr.bf16.mxu0 %v665
          %729 = vmatpush1.bf16.msra.mxu0 %v664
          %730 = vmatprep.subr.bf16.mxu0 %v667
          %731 = vmatpush1.bf16.msra.mxu0 %v666
          %732 = vmatprep.subr.bf16.mxu0 %v669
          %733 = vmatpush1.bf16.msra.mxu0 %v668
          %734 = vmatprep.subr.bf16.mxu0 %v671
          %735 = vmatpush1.bf16.msra.mxu0 %v670
          %736 = vmatprep.subr.bf16.mxu0 %v673
          %737 = vmatpush1.bf16.msra.mxu0 %v672
          %738 = vmatprep.subr.bf16.mxu0 %v675
          %739 = vmatpush1.bf16.msra.mxu0 %v674
          %740 = vmatprep.subr.bf16.mxu0 %v677
          %741 = vmatpush1.bf16.msra.mxu0 %v676
          %742 = vmatprep.subr.bf16.mxu0 %v679
          %743 = vmatpush1.bf16.msra.mxu0 %v678
          %744 = vmatprep.subr.bf16.mxu0 %v681
          %745 = vmatpush1.bf16.msra.mxu0 %v680
          %746 = vmatprep.subr.bf16.mxu0 %v683
          %747 = vmatpush1.bf16.msra.mxu0 %v682
          %748 = vmatprep.subr.bf16.mxu0 %v685
          %749 = vmatpush1.bf16.msra.mxu0 %v684
          %750 = vmatprep.subr.bf16.mxu0 %v687
          %751 = vmatpush1.bf16.msra.mxu0 %v686
          %752 = vmatprep.subr.bf16.mxu0 %v689
          %753 = vmatpush1.bf16.msra.mxu0 %v688
          %754 = vmatprep.mubr.bf16.mxu0 %v531
          %755 = vmatmul.mubr.bf16.gmra.mrb[0].mxu0 %v530
          %v756 = vpop.f32.mrb[0].mxu0
          %v757 = vadd.f32 0.0, %v756
          %v758 = vpop.f32.mrb[0].mxu0
          %v759 = vadd.f32 0.0, %v758
          %v760 = vpop.f32.mrb[0].mxu0
          %v761 = vadd.f32 0.0, %v760
          %v762 = vpop.f32.mrb[0].mxu0
          %v763 = vadd.f32 0.0, %v762
          %764 = vmatprep.mubr.bf16.mxu0 %v533
          %765 = vmatmul.mubr.bf16.gmra.mrb[0].mxu0 %v532
          %v766 = vpop.f32.mrb[0].mxu0
          %v767 = vadd.f32 0.0, %v766
          %v768 = vpop.f32.mrb[0].mxu0
          %v769 = vadd.f32 0.0, %v768
          %v770 = vpop.f32.mrb[0].mxu0
          %v771 = vadd.f32 0.0, %v770
          %v772 = vpop.f32.mrb[0].mxu0
          %v773 = vadd.f32 0.0, %v772
          %774 = vmatprep.mubr.bf16.mxu0 %v535
          %775 = vmatmul.mubr.bf16.gmra.mrb[0].mxu0 %v534
          %v776 = vpop.f32.mrb[0].mxu0
          %v777 = vadd.f32 0.0, %v776
          %v778 = vpop.f32.mrb[0].mxu0
          %v779 = vadd.f32 0.0, %v778
          %v780 = vpop.f32.mrb[0].mxu0
          %v781 = vadd.f32 0.0, %v780
          %v782 = vpop.f32.mrb[0].mxu0
          %v783 = vadd.f32 0.0, %v782
          %784 = vmatprep.mubr.bf16.mxu0 %v537
          %785 = vmatmul.mubr.bf16.gmra.mrb[0].mxu0 %v536
          %v786 = vpop.f32.mrb[0].mxu0
          %v787 = vadd.f32 0.0, %v786
          %v788 = vpop.f32.mrb[0].mxu0
          %v789 = vadd.f32 0.0, %v788
          %v790 = vpop.f32.mrb[0].mxu0
          %v791 = vadd.f32 0.0, %v790
          %v792 = vpop.f32.mrb[0].mxu0
          %v793 = vadd.f32 0.0, %v792
          %794 = vmatprep.mubr.bf16.mxu0 %v539
          %795 = vmatmul.mubr.bf16.gmra.mrb[0].mxu0 %v538
          %v796 = vpop.f32.mrb[0].mxu0
          %v797 = vadd.f32 0.0, %v796
          %v798 = vpop.f32.mrb[0].mxu0
          %v799 = vadd.f32 0.0, %v798
          %v800 = vpop.f32.mrb[0].mxu0
          %v801 = vadd.f32 0.0, %v800
          %v802 = vpop.f32.mrb[0].mxu0
          %v803 = vadd.f32 0.0, %v802
          %804 = vmatprep.mubr.bf16.mxu0 %v541
          %805 = vmatmul.mubr.bf16.gmra.mrb[0].mxu0 %v540
          %v806 = vpop.f32.mrb[0].mxu0
          %v807 = vadd.f32 0.0, %v806
          %v808 = vpop.f32.mrb[0].mxu0
          %v809 = vadd.f32 0.0, %v808
          %v810 = vpop.f32.mrb[0].mxu0
          %v811 = vadd.f32 0.0, %v810
          %v812 = vpop.f32.mrb[0].mxu0
          %v813 = vadd.f32 0.0, %v812
          %814 = vmatprep.mubr.bf16.mxu0 %v543
          %815 = vmatmul.mubr.bf16.gmra.mrb[0].mxu0 %v542
          %v816 = vpop.f32.mrb[0].mxu0
          %v817 = vadd.f32 0.0, %v816
          %v818 = vpop.f32.mrb[0].mxu0
          %v819 = vadd.f32 0.0, %v818
          %v820 = vpop.f32.mrb[0].mxu0
          %v821 = vadd.f32 0.0, %v820
          %v822 = vpop.f32.mrb[0].mxu0
          %v823 = vadd.f32 0.0, %v822
          %824 = vmatprep.mubr.bf16.mxu0 %v545
          %825 = vmatmul.mubr.bf16.gmra.mrb[0].mxu0 %v544
          %v826 = vpop.f32.mrb[0].mxu0
          %v827 = vadd.f32 0.0, %v826
          %v828 = vpop.f32.mrb[0].mxu0
          %v829 = vadd.f32 0.0, %v828
          %v830 = vpop.f32.mrb[0].mxu0
          %v831 = vadd.f32 0.0, %v830
          %v832 = vpop.f32.mrb[0].mxu0
          %v833 = vadd.f32 0.0, %v832
          %834 = vdwg.mxu0
          %835 = vst [vmem:[#allocation2] sm:$0xff] %v757
          %836 = vst [vmem:[#allocation2 + $0x8] sm:$0xff] %v761
          %837 = vst [vmem:[#allocation2 + $0x10] sm:$0xff] %v767
          %838 = vst [vmem:[#allocation2 + $0x18] sm:$0xff] %v771
          %839 = vst [vmem:[#allocation2 + $0x20] sm:$0xff] %v777
          %840 = vst [vmem:[#allocation2 + $0x28] sm:$0xff] %v781
          %841 = vst [vmem:[#allocation2 + $0x30] sm:$0xff] %v787
          %842 = vst [vmem:[#allocation2 + $0x38] sm:$0xff] %v791
          %843 = vst [vmem:[#allocation2 + $0x40] sm:$0xff] %v797
          %844 = vst [vmem:[#allocation2 + $0x48] sm:$0xff] %v801
          %845 = vst [vmem:[#allocation2 + $0x50] sm:$0xff] %v807
          %846 = vst [vmem:[#allocation2 + $0x58] sm:$0xff] %v811
          %847 = vst [vmem:[#allocation2 + $0x60] sm:$0xff] %v817
          %848 = vst [vmem:[#allocation2 + $0x68] sm:$0xff] %v821
          %849 = vst [vmem:[#allocation2 + $0x70] sm:$0xff] %v827
          %850 = vst [vmem:[#allocation2 + $0x78] sm:$0xff] %v831
          %851 = vst [vmem:[#allocation3] sm:$0xff] %v759
          %852 = vst [vmem:[#allocation3 + $0x8] sm:$0xff] %v763
          %853 = vst [vmem:[#allocation3 + $0x10] sm:$0xff] %v769
          %854 = vst [vmem:[#allocation3 + $0x18] sm:$0xff] %v773
          %855 = vst [vmem:[#allocation3 + $0x20] sm:$0xff] %v779
          %856 = vst [vmem:[#allocation3 + $0x28] sm:$0xff] %v783
          %857 = vst [vmem:[#allocation3 + $0x30] sm:$0xff] %v789
          %858 = vst [vmem:[#allocation3 + $0x38] sm:$0xff] %v793
          %859 = vst [vmem:[#allocation3 + $0x40] sm:$0xff] %v799
          %860 = vst [vmem:[#allocation3 + $0x48] sm:$0xff] %v803
          %861 = vst [vmem:[#allocation3 + $0x50] sm:$0xff] %v809
          %862 = vst [vmem:[#allocation3 + $0x58] sm:$0xff] %v813
          %863 = vst [vmem:[#allocation3 + $0x60] sm:$0xff] %v819
          %864 = vst [vmem:[#allocation3 + $0x68] sm:$0xff] %v823
          %865 = vst [vmem:[#allocation3 + $0x70] sm:$0xff] %v829
          %866 = vst [vmem:[#allocation3 + $0x78] sm:$0xff] %v833
          %867 = vst [vmem:[#allocation4] sm:$0xff] 0.0
          %868 = vst [vmem:[#allocation4 + $0x8] sm:$0xff] 0.0
          %869 = vst [vmem:[#allocation4 + $0x10] sm:$0xff] 0.0
          %870 = vst [vmem:[#allocation4 + $0x18] sm:$0xff] 0.0
          %871 = vst [vmem:[#allocation4 + $0x20] sm:$0xff] 0.0
          %872 = vst [vmem:[#allocation4 + $0x28] sm:$0xff] 0.0
          %873 = vst [vmem:[#allocation4 + $0x30] sm:$0xff] 0.0
          %874 = vst [vmem:[#allocation4 + $0x38] sm:$0xff] 0.0
          %875 = vst [vmem:[#allocation4 + $0x40] sm:$0xff] 0.0
          %876 = vst [vmem:[#allocation4 + $0x48] sm:$0xff] 0.0
          %877 = vst [vmem:[#allocation4 + $0x50] sm:$0xff] 0.0
          %878 = vst [vmem:[#allocation4 + $0x58] sm:$0xff] 0.0
          %879 = vst [vmem:[#allocation4 + $0x60] sm:$0xff] 0.0
          %880 = vst [vmem:[#allocation4 + $0x68] sm:$0xff] 0.0
          %881 = vst [vmem:[#allocation4 + $0x70] sm:$0xff] 0.0
          %882 = vst [vmem:[#allocation4 + $0x78] sm:$0xff] 0.0
        $region72: #{tpu_custom_call.1} parent=43 // pred_fallthru
          _
        %v883 = vld [vmem:[#allocation2] sm:$0xff]
        %v884 = vld [vmem:[#allocation2 + $0x8] sm:$0xff]
        %v885 = vld [vmem:[#allocation2 + $0x10] sm:$0xff]
        %v886 = vld [vmem:[#allocation2 + $0x18] sm:$0xff]
        %v887 = vld [vmem:[#allocation2 + $0x20] sm:$0xff]
        %v888 = vld [vmem:[#allocation2 + $0x28] sm:$0xff]
        %v889 = vld [vmem:[#allocation2 + $0x30] sm:$0xff]
        %v890 = vld [vmem:[#allocation2 + $0x38] sm:$0xff]
        %v891 = vld [vmem:[#allocation2 + $0x40] sm:$0xff]
        %v892 = vld [vmem:[#allocation2 + $0x48] sm:$0xff]
        %v893 = vld [vmem:[#allocation2 + $0x50] sm:$0xff]
        %v894 = vld [vmem:[#allocation2 + $0x58] sm:$0xff]
        %v895 = vld [vmem:[#allocation2 + $0x60] sm:$0xff]
        %v896 = vld [vmem:[#allocation2 + $0x68] sm:$0xff]
        %v897 = vld [vmem:[#allocation2 + $0x70] sm:$0xff]
        %v898 = vld [vmem:[#allocation2 + $0x78] sm:$0xff]
        %v899 = vpack.c.bf16 %v884, %v883
        %v900 = vpack.c.bf16 %v886, %v885
        %v901 = vpack.c.bf16 %v888, %v887
        %v902 = vpack.c.bf16 %v890, %v889
        %v903 = vpack.c.bf16 %v892, %v891
        %v904 = vpack.c.bf16 %v894, %v893
        %v905 = vpack.c.bf16 %v896, %v895
        %v906 = vpack.c.bf16 %v898, %v897
        %v907 = vld [vmem:[%s357] sm:$0xff]
        %v908 = vld [vmem:[%s357 + $0x8] sm:$0xff]
        %v909 = vld [vmem:[%s357 + $0x10] sm:$0xff]
        %v910 = vld [vmem:[%s357 + $0x18] sm:$0xff]
        %v911 = vld [vmem:[%s357 + $0x20] sm:$0xff]
        %v912 = vld [vmem:[%s357 + $0x28] sm:$0xff]
        %v913 = vld [vmem:[%s357 + $0x30] sm:$0xff]
        %v914 = vld [vmem:[%s357 + $0x38] sm:$0xff]
        %v915 = vld [vmem:[%s357 + $0x40] sm:$0xff]
        %v916 = vld [vmem:[%s357 + $0x48] sm:$0xff]
        %v917 = vld [vmem:[%s357 + $0x50] sm:$0xff]
        %v918 = vld [vmem:[%s357 + $0x58] sm:$0xff]
        %v919 = vld [vmem:[%s357 + $0x60] sm:$0xff]
        %v920 = vld [vmem:[%s357 + $0x68] sm:$0xff]
        %v921 = vld [vmem:[%s357 + $0x70] sm:$0xff]
        %v922 = vld [vmem:[%s357 + $0x78] sm:$0xff]
        %v939 = vunpack.c.l.b16 %v907
        %v940 = vunpack.c.h.b16 %v907
        %v941 = vunpack.c.l.b16 %v908
        %v942 = vunpack.c.h.b16 %v908
        %v943 = vunpack.c.l.b16 %v909
        %v944 = vunpack.c.h.b16 %v909
        %v945 = vunpack.c.l.b16 %v910
        %v946 = vunpack.c.h.b16 %v910
        %v947 = vunpack.c.l.b16 %v911
        %v948 = vunpack.c.h.b16 %v911
        %v949 = vunpack.c.l.b16 %v912
        %v950 = vunpack.c.h.b16 %v912
        %v951 = vunpack.c.l.b16 %v913
        %v952 = vunpack.c.h.b16 %v913
        %v953 = vunpack.c.l.b16 %v914
        %v954 = vunpack.c.h.b16 %v914
        %v955 = vunpack.c.l.b16 %v915
        %v956 = vunpack.c.h.b16 %v915
        %v957 = vunpack.c.l.b16 %v916
        %v958 = vunpack.c.h.b16 %v916
        %v959 = vunpack.c.l.b16 %v917
        %v960 = vunpack.c.h.b16 %v917
        %v961 = vunpack.c.l.b16 %v918
        %v962 = vunpack.c.h.b16 %v918
        %v963 = vunpack.c.l.b16 %v919
        %v964 = vunpack.c.h.b16 %v919
        %v965 = vunpack.c.l.b16 %v920
        %v966 = vunpack.c.h.b16 %v920
        %v967 = vunpack.c.l.b16 %v921
        %v968 = vunpack.c.h.b16 %v921
        %v969 = vunpack.c.l.b16 %v922
        %v970 = vunpack.c.h.b16 %v922
        %v971 = vpack.c.b16 %v941, %v939
        %v972 = vpack.c.b16 %v942, %v940
        %v973 = vpack.c.b16 %v945, %v943
        %v974 = vpack.c.b16 %v946, %v944
        %v975 = vpack.c.b16 %v949, %v947
        %v976 = vpack.c.b16 %v950, %v948
        %v977 = vpack.c.b16 %v953, %v951
        %v978 = vpack.c.b16 %v954, %v952
        %v979 = vpack.c.b16 %v957, %v955
        %v980 = vpack.c.b16 %v958, %v956
        %v981 = vpack.c.b16 %v961, %v959
        %v982 = vpack.c.b16 %v962, %v960
        %v983 = vpack.c.b16 %v965, %v963
        %v984 = vpack.c.b16 %v966, %v964
        %v985 = vpack.c.b16 %v969, %v967
        %v986 = vpack.c.b16 %v970, %v968
        %1003 = vmatprep.subr.bf16.mxu0 %v972
        %1004 = vmatpush1.bf16.msra.mxu0 %v971
        %1005 = vmatprep.subr.bf16.mxu0 %v974
        %1006 = vmatpush1.bf16.msra.mxu0 %v973
        %1007 = vmatprep.subr.bf16.mxu0 %v976
        %1008 = vmatpush1.bf16.msra.mxu0 %v975
        %1009 = vmatprep.subr.bf16.mxu0 %v978
        %1010 = vmatpush1.bf16.msra.mxu0 %v977
        %1011 = vmatprep.subr.bf16.mxu0 %v980
        %1012 = vmatpush1.bf16.msra.mxu0 %v979
        %1013 = vmatprep.subr.bf16.mxu0 %v982
        %1014 = vmatpush1.bf16.msra.mxu0 %v981
        %1015 = vmatprep.subr.bf16.mxu0 %v984
        %1016 = vmatpush1.bf16.msra.mxu0 %v983
        %1017 = vmatprep.subr.bf16.mxu0 %v986
        %1018 = vmatpush1.bf16.msra.mxu0 %v985
        %1019 = vmatprep.subr.bf16.mxu0 0
        %1020 = vmatpush1.bf16.msra.mxu0 0
        %1021 = vmatprep.subr.bf16.mxu0 0
        %1022 = vmatpush1.bf16.msra.mxu0 0
        %1023 = vmatprep.subr.bf16.mxu0 0
        %1024 = vmatpush1.bf16.msra.mxu0 0
        %1025 = vmatprep.subr.bf16.mxu0 0
        %1026 = vmatpush1.bf16.msra.mxu0 0
        %1027 = vmatprep.subr.bf16.mxu0 0
        %1028 = vmatpush1.bf16.msra.mxu0 0
        %1029 = vmatprep.subr.bf16.mxu0 0
        %1030 = vmatpush1.bf16.msra.mxu0 0
        %1031 = vmatprep.subr.bf16.mxu0 0
        %1032 = vmatpush1.bf16.msra.mxu0 0
        %1033 = vmatprep.subr.bf16.mxu0 0
        %1034 = vmatpush1.bf16.msra.mxu0 0
        %1035 = vmatprep.mubr.bf16.mxu0 0
        %1036 = vmatmul.mubr.bf16.gmra.mrb[0].mxu0 %v899
        %v1037 = vpop.f32.mrb[0].mxu0
        %v1038 = vadd.f32 0.0, %v1037
        %v1039 = vpop.f32.mrb[0].mxu0
        %v1040 = vadd.f32 0.0, %v1039
        %v1041 = vpop.f32.mrb[0].mxu0
        %v1042 = vadd.f32 0.0, %v1041
        %v1043 = vpop.f32.mrb[0].mxu0
        %v1044 = vadd.f32 0.0, %v1043
        %1045 = vmatprep.mubr.bf16.mxu0 0
        %1046 = vmatmul.mubr.bf16.gmra.mrb[0].mxu0 %v900
        %v1047 = vpop.f32.mrb[0].mxu0
        %v1048 = vadd.f32 0.0, %v1047
        %v1049 = vpop.f32.mrb[0].mxu0
        %v1050 = vadd.f32 0.0, %v1049
        %v1051 = vpop.f32.mrb[0].mxu0
        %v1052 = vadd.f32 0.0, %v1051
        %v1053 = vpop.f32.mrb[0].mxu0
        %v1054 = vadd.f32 0.0, %v1053
        %1055 = vmatprep.mubr.bf16.mxu0 0
        %1056 = vmatmul.mubr.bf16.gmra.mrb[0].mxu0 %v901
        %v1057 = vpop.f32.mrb[0].mxu0
        %v1058 = vadd.f32 0.0, %v1057
        %v1059 = vpop.f32.mrb[0].mxu0
        %v1060 = vadd.f32 0.0, %v1059
        %v1061 = vpop.f32.mrb[0].mxu0
        %v1062 = vadd.f32 0.0, %v1061
        %v1063 = vpop.f32.mrb[0].mxu0
        %v1064 = vadd.f32 0.0, %v1063
        %1065 = vmatprep.mubr.bf16.mxu0 0
        %1066 = vmatmul.mubr.bf16.gmra.mrb[0].mxu0 %v902
        %v1067 = vpop.f32.mrb[0].mxu0
        %v1068 = vadd.f32 0.0, %v1067
        %v1069 = vpop.f32.mrb[0].mxu0
        %v1070 = vadd.f32 0.0, %v1069
        %v1071 = vpop.f32.mrb[0].mxu0
        %v1072 = vadd.f32 0.0, %v1071
        %v1073 = vpop.f32.mrb[0].mxu0
        %v1074 = vadd.f32 0.0, %v1073
        %1075 = vmatprep.mubr.bf16.mxu0 0
        %1076 = vmatmul.mubr.bf16.gmra.mrb[0].mxu0 %v903
        %v1077 = vpop.f32.mrb[0].mxu0
        %v1078 = vadd.f32 0.0, %v1077
        %v1079 = vpop.f32.mrb[0].mxu0
        %v1080 = vadd.f32 0.0, %v1079
        %v1081 = vpop.f32.mrb[0].mxu0
        %v1082 = vadd.f32 0.0, %v1081
        %v1083 = vpop.f32.mrb[0].mxu0
        %v1084 = vadd.f32 0.0, %v1083
        %1085 = vmatprep.mubr.bf16.mxu0 0
        %1086 = vmatmul.mubr.bf16.gmra.mrb[0].mxu0 %v904
        %v1087 = vpop.f32.mrb[0].mxu0
        %v1088 = vadd.f32 0.0, %v1087
        %v1089 = vpop.f32.mrb[0].mxu0
        %v1090 = vadd.f32 0.0, %v1089
        %v1091 = vpop.f32.mrb[0].mxu0
        %v1092 = vadd.f32 0.0, %v1091
        %v1093 = vpop.f32.mrb[0].mxu0
        %v1094 = vadd.f32 0.0, %v1093
        %1095 = vmatprep.mubr.bf16.mxu0 0
        %1096 = vmatmul.mubr.bf16.gmra.mrb[0].mxu0 %v905
        %v1097 = vpop.f32.mrb[0].mxu0
        %v1098 = vadd.f32 0.0, %v1097
        %v1099 = vpop.f32.mrb[0].mxu0
        %v1100 = vadd.f32 0.0, %v1099
        %v1101 = vpop.f32.mrb[0].mxu0
        %v1102 = vadd.f32 0.0, %v1101
        %v1103 = vpop.f32.mrb[0].mxu0
        %v1104 = vadd.f32 0.0, %v1103
        %1105 = vmatprep.mubr.bf16.mxu0 0
        %1106 = vmatmul.mubr.bf16.gmra.mrb[0].mxu0 %v906
        %v1107 = vpop.f32.mrb[0].mxu0
        %v1108 = vadd.f32 0.0, %v1107
        %v1109 = vpop.f32.mrb[0].mxu0
        %v1110 = vadd.f32 0.0, %v1109
        %v1111 = vpop.f32.mrb[0].mxu0
        %v1112 = vadd.f32 0.0, %v1111
        %v1113 = vpop.f32.mrb[0].mxu0
        %v1114 = vadd.f32 0.0, %v1113
        %1115 = vdwg.mxu0
        %v1116 = vpack.c.bf16 %v1042, %v1038
        %v1117 = vpack.c.bf16 %v1044, %v1040
        %v1118 = vpack.c.bf16 %v1052, %v1048
        %v1119 = vpack.c.bf16 %v1054, %v1050
        %v1120 = vpack.c.bf16 %v1062, %v1058
        %v1121 = vpack.c.bf16 %v1064, %v1060
        %v1122 = vpack.c.bf16 %v1072, %v1068
        %v1123 = vpack.c.bf16 %v1074, %v1070
        %v1124 = vpack.c.bf16 %v1082, %v1078
        %v1125 = vpack.c.bf16 %v1084, %v1080
        %v1126 = vpack.c.bf16 %v1092, %v1088
        %v1127 = vpack.c.bf16 %v1094, %v1090
        %v1128 = vpack.c.bf16 %v1102, %v1098
        %v1129 = vpack.c.bf16 %v1104, %v1100
        %v1130 = vpack.c.bf16 %v1112, %v1108
        %v1131 = vpack.c.bf16 %v1114, %v1110
        %v1132 = vld [vmem:[#allocation3] sm:$0xff]
        %v1133 = vld [vmem:[#allocation3 + $0x8] sm:$0xff]
        %v1134 = vld [vmem:[#allocation3 + $0x10] sm:$0xff]
        %v1135 = vld [vmem:[#allocation3 + $0x18] sm:$0xff]
        %v1136 = vld [vmem:[#allocation3 + $0x20] sm:$0xff]
        %v1137 = vld [vmem:[#allocation3 + $0x28] sm:$0xff]
        %v1138 = vld [vmem:[#allocation3 + $0x30] sm:$0xff]
        %v1139 = vld [vmem:[#allocation3 + $0x38] sm:$0xff]
        %v1140 = vld [vmem:[#allocation3 + $0x40] sm:$0xff]
        %v1141 = vld [vmem:[#allocation3 + $0x48] sm:$0xff]
        %v1142 = vld [vmem:[#allocation3 + $0x50] sm:$0xff]
        %v1143 = vld [vmem:[#allocation3 + $0x58] sm:$0xff]
        %v1144 = vld [vmem:[#allocation3 + $0x60] sm:$0xff]
        %v1145 = vld [vmem:[#allocation3 + $0x68] sm:$0xff]
        %v1146 = vld [vmem:[#allocation3 + $0x70] sm:$0xff]
        %v1147 = vld [vmem:[#allocation3 + $0x78] sm:$0xff]
        %v1148 = vpack.c.bf16 %v1133, %v1132
        %v1149 = vpack.c.bf16 %v1135, %v1134
        %v1150 = vpack.c.bf16 %v1137, %v1136
        %v1151 = vpack.c.bf16 %v1139, %v1138
        %v1152 = vpack.c.bf16 %v1141, %v1140
        %v1153 = vpack.c.bf16 %v1143, %v1142
        %v1154 = vpack.c.bf16 %v1145, %v1144
        %v1155 = vpack.c.bf16 %v1147, %v1146
        %v1156 = vld [vmem:[%s366] sm:$0xff]
        %v1157 = vld [vmem:[%s366 + $0x8] sm:$0xff]
        %v1158 = vld [vmem:[%s366 + $0x10] sm:$0xff]
        %v1159 = vld [vmem:[%s366 + $0x18] sm:$0xff]
        %v1160 = vld [vmem:[%s366 + $0x20] sm:$0xff]
        %v1161 = vld [vmem:[%s366 + $0x28] sm:$0xff]
        %v1162 = vld [vmem:[%s366 + $0x30] sm:$0xff]
        %v1163 = vld [vmem:[%s366 + $0x38] sm:$0xff]
        %v1164 = vld [vmem:[%s366 + $0x40] sm:$0xff]
        %v1165 = vld [vmem:[%s366 + $0x48] sm:$0xff]
        %v1166 = vld [vmem:[%s366 + $0x50] sm:$0xff]
        %v1167 = vld [vmem:[%s366 + $0x58] sm:$0xff]
        %v1168 = vld [vmem:[%s366 + $0x60] sm:$0xff]
        %v1169 = vld [vmem:[%s366 + $0x68] sm:$0xff]
        %v1170 = vld [vmem:[%s366 + $0x70] sm:$0xff]
        %v1171 = vld [vmem:[%s366 + $0x78] sm:$0xff]
        %v1188 = vunpack.c.l.b16 %v1156
        %v1189 = vunpack.c.h.b16 %v1156
        %v1190 = vunpack.c.l.b16 %v1157
        %v1191 = vunpack.c.h.b16 %v1157
        %v1192 = vunpack.c.l.b16 %v1158
        %v1193 = vunpack.c.h.b16 %v1158
        %v1194 = vunpack.c.l.b16 %v1159
        %v1195 = vunpack.c.h.b16 %v1159
        %v1196 = vunpack.c.l.b16 %v1160
        %v1197 = vunpack.c.h.b16 %v1160
        %v1198 = vunpack.c.l.b16 %v1161
        %v1199 = vunpack.c.h.b16 %v1161
        %v1200 = vunpack.c.l.b16 %v1162
        %v1201 = vunpack.c.h.b16 %v1162
        %v1202 = vunpack.c.l.b16 %v1163
        %v1203 = vunpack.c.h.b16 %v1163
        %v1204 = vunpack.c.l.b16 %v1164
        %v1205 = vunpack.c.h.b16 %v1164
        %v1206 = vunpack.c.l.b16 %v1165
        %v1207 = vunpack.c.h.b16 %v1165
        %v1208 = vunpack.c.l.b16 %v1166
        %v1209 = vunpack.c.h.b16 %v1166
        %v1210 = vunpack.c.l.b16 %v1167
        %v1211 = vunpack.c.h.b16 %v1167
        %v1212 = vunpack.c.l.b16 %v1168
        %v1213 = vunpack.c.h.b16 %v1168
        %v1214 = vunpack.c.l.b16 %v1169
        %v1215 = vunpack.c.h.b16 %v1169
        %v1216 = vunpack.c.l.b16 %v1170
        %v1217 = vunpack.c.h.b16 %v1170
        %v1218 = vunpack.c.l.b16 %v1171
        %v1219 = vunpack.c.h.b16 %v1171
        %v1220 = vpack.c.b16 %v1190, %v1188
        %v1221 = vpack.c.b16 %v1191, %v1189
        %v1222 = vpack.c.b16 %v1194, %v1192
        %v1223 = vpack.c.b16 %v1195, %v1193
        %v1224 = vpack.c.b16 %v1198, %v1196
        %v1225 = vpack.c.b16 %v1199, %v1197
        %v1226 = vpack.c.b16 %v1202, %v1200
        %v1227 = vpack.c.b16 %v1203, %v1201
        %v1228 = vpack.c.b16 %v1206, %v1204
        %v1229 = vpack.c.b16 %v1207, %v1205
        %v1230 = vpack.c.b16 %v1210, %v1208
        %v1231 = vpack.c.b16 %v1211, %v1209
        %v1232 = vpack.c.b16 %v1214, %v1212
        %v1233 = vpack.c.b16 %v1215, %v1213
        %v1234 = vpack.c.b16 %v1218, %v1216
        %v1235 = vpack.c.b16 %v1219, %v1217
        %1252 = vmatprep.subr.bf16.mxu0 %v1221
        %1253 = vmatpush1.bf16.msra.mxu0 %v1220
        %1254 = vmatprep.subr.bf16.mxu0 %v1223
        %1255 = vmatpush1.bf16.msra.mxu0 %v1222
        %1256 = vmatprep.subr.bf16.mxu0 %v1225
        %1257 = vmatpush1.bf16.msra.mxu0 %v1224
        %1258 = vmatprep.subr.bf16.mxu0 %v1227
        %1259 = vmatpush1.bf16.msra.mxu0 %v1226
        %1260 = vmatprep.subr.bf16.mxu0 %v1229
        %1261 = vmatpush1.bf16.msra.mxu0 %v1228
        %1262 = vmatprep.subr.bf16.mxu0 %v1231
        %1263 = vmatpush1.bf16.msra.mxu0 %v1230
        %1264 = vmatprep.subr.bf16.mxu0 %v1233
        %1265 = vmatpush1.bf16.msra.mxu0 %v1232
        %1266 = vmatprep.subr.bf16.mxu0 %v1235
        %1267 = vmatpush1.bf16.msra.mxu0 %v1234
        %1268 = vmatprep.subr.bf16.mxu0 0
        %1269 = vmatpush1.bf16.msra.mxu0 0
        %1270 = vmatprep.subr.bf16.mxu0 0
        %1271 = vmatpush1.bf16.msra.mxu0 0
        %1272 = vmatprep.subr.bf16.mxu0 0
        %1273 = vmatpush1.bf16.msra.mxu0 0
        %1274 = vmatprep.subr.bf16.mxu0 0
        %1275 = vmatpush1.bf16.msra.mxu0 0
        %1276 = vmatprep.subr.bf16.mxu0 0
        %1277 = vmatpush1.bf16.msra.mxu0 0
        %1278 = vmatprep.subr.bf16.mxu0 0
        %1279 = vmatpush1.bf16.msra.mxu0 0
        %1280 = vmatprep.subr.bf16.mxu0 0
        %1281 = vmatpush1.bf16.msra.mxu0 0
        %1282 = vmatprep.subr.bf16.mxu0 0
        %1283 = vmatpush1.bf16.msra.mxu0 0
        %1284 = vmatprep.mubr.bf16.mxu0 0
        %1285 = vmatmul.mubr.bf16.gmra.mrb[0].mxu0 %v1148
        %v1286 = vpop.f32.mrb[0].mxu0
        %v1287 = vadd.f32 0.0, %v1286
        %v1288 = vpop.f32.mrb[0].mxu0
        %v1289 = vadd.f32 0.0, %v1288
        %v1290 = vpop.f32.mrb[0].mxu0
        %v1291 = vadd.f32 0.0, %v1290
        %v1292 = vpop.f32.mrb[0].mxu0
        %v1293 = vadd.f32 0.0, %v1292
        %1294 = vmatprep.mubr.bf16.mxu0 0
        %1295 = vmatmul.mubr.bf16.gmra.mrb[0].mxu0 %v1149
        %v1296 = vpop.f32.mrb[0].mxu0
        %v1297 = vadd.f32 0.0, %v1296
        %v1298 = vpop.f32.mrb[0].mxu0
        %v1299 = vadd.f32 0.0, %v1298
        %v1300 = vpop.f32.mrb[0].mxu0
        %v1301 = vadd.f32 0.0, %v1300
        %v1302 = vpop.f32.mrb[0].mxu0
        %v1303 = vadd.f32 0.0, %v1302
        %1304 = vmatprep.mubr.bf16.mxu0 0
        %1305 = vmatmul.mubr.bf16.gmra.mrb[0].mxu0 %v1150
        %v1306 = vpop.f32.mrb[0].mxu0
        %v1307 = vadd.f32 0.0, %v1306
        %v1308 = vpop.f32.mrb[0].mxu0
        %v1309 = vadd.f32 0.0, %v1308
        %v1310 = vpop.f32.mrb[0].mxu0
        %v1311 = vadd.f32 0.0, %v1310
        %v1312 = vpop.f32.mrb[0].mxu0
        %v1313 = vadd.f32 0.0, %v1312
        %1314 = vmatprep.mubr.bf16.mxu0 0
        %1315 = vmatmul.mubr.bf16.gmra.mrb[0].mxu0 %v1151
        %v1316 = vpop.f32.mrb[0].mxu0
        %v1317 = vadd.f32 0.0, %v1316
        %v1318 = vpop.f32.mrb[0].mxu0
        %v1319 = vadd.f32 0.0, %v1318
        %v1320 = vpop.f32.mrb[0].mxu0
        %v1321 = vadd.f32 0.0, %v1320
        %v1322 = vpop.f32.mrb[0].mxu0
        %v1323 = vadd.f32 0.0, %v1322
        %1324 = vmatprep.mubr.bf16.mxu0 0
        %1325 = vmatmul.mubr.bf16.gmra.mrb[0].mxu0 %v1152
        %v1326 = vpop.f32.mrb[0].mxu0
        %v1327 = vadd.f32 0.0, %v1326
        %v1328 = vpop.f32.mrb[0].mxu0
        %v1329 = vadd.f32 0.0, %v1328
        %v1330 = vpop.f32.mrb[0].mxu0
        %v1331 = vadd.f32 0.0, %v1330
        %v1332 = vpop.f32.mrb[0].mxu0
        %v1333 = vadd.f32 0.0, %v1332
        %1334 = vmatprep.mubr.bf16.mxu0 0
        %1335 = vmatmul.mubr.bf16.gmra.mrb[0].mxu0 %v1153
        %v1336 = vpop.f32.mrb[0].mxu0
        %v1337 = vadd.f32 0.0, %v1336
        %v1338 = vpop.f32.mrb[0].mxu0
        %v1339 = vadd.f32 0.0, %v1338
        %v1340 = vpop.f32.mrb[0].mxu0
        %v1341 = vadd.f32 0.0, %v1340
        %v1342 = vpop.f32.mrb[0].mxu0
        %v1343 = vadd.f32 0.0, %v1342
        %1344 = vmatprep.mubr.bf16.mxu0 0
        %1345 = vmatmul.mubr.bf16.gmra.mrb[0].mxu0 %v1154
        %v1346 = vpop.f32.mrb[0].mxu0
        %v1347 = vadd.f32 0.0, %v1346
        %v1348 = vpop.f32.mrb[0].mxu0
        %v1349 = vadd.f32 0.0, %v1348
        %v1350 = vpop.f32.mrb[0].mxu0
        %v1351 = vadd.f32 0.0, %v1350
        %v1352 = vpop.f32.mrb[0].mxu0
        %v1353 = vadd.f32 0.0, %v1352
        %1354 = vmatprep.mubr.bf16.mxu0 0
        %1355 = vmatmul.mubr.bf16.gmra.mrb[0].mxu0 %v1155
        %v1356 = vpop.f32.mrb[0].mxu0
        %v1357 = vadd.f32 0.0, %v1356
        %v1358 = vpop.f32.mrb[0].mxu0
        %v1359 = vadd.f32 0.0, %v1358
        %v1360 = vpop.f32.mrb[0].mxu0
        %v1361 = vadd.f32 0.0, %v1360
        %v1362 = vpop.f32.mrb[0].mxu0
        %v1363 = vadd.f32 0.0, %v1362
        %1364 = vdwg.mxu0
        %v1365 = vpack.c.bf16 %v1291, %v1287
        %v1366 = vpack.c.bf16 %v1293, %v1289
        %v1367 = vpack.c.bf16 %v1301, %v1297
        %v1368 = vpack.c.bf16 %v1303, %v1299
        %v1369 = vpack.c.bf16 %v1311, %v1307
        %v1370 = vpack.c.bf16 %v1313, %v1309
        %v1371 = vpack.c.bf16 %v1321, %v1317
        %v1372 = vpack.c.bf16 %v1323, %v1319
        %v1373 = vpack.c.bf16 %v1331, %v1327
        %v1374 = vpack.c.bf16 %v1333, %v1329
        %v1375 = vpack.c.bf16 %v1341, %v1337
        %v1376 = vpack.c.bf16 %v1343, %v1339
        %v1377 = vpack.c.bf16 %v1351, %v1347
        %v1378 = vpack.c.bf16 %v1353, %v1349
        %v1379 = vpack.c.bf16 %v1361, %v1357
        %v1380 = vpack.c.bf16 %v1363, %v1359
        %v1381 = vmul.bf16 %v1116, 1056980736
        %v1382 = vmul.bf16 %v1117, 1056980736
        %v1383 = vmul.bf16 %v1118, 1056980736
        %v1384 = vmul.bf16 %v1119, 1056980736
        %v1385 = vmul.bf16 %v1120, 1056980736
        %v1386 = vmul.bf16 %v1121, 1056980736
        %v1387 = vmul.bf16 %v1122, 1056980736
        %v1388 = vmul.bf16 %v1123, 1056980736
        %v1389 = vmul.bf16 %v1124, 1056980736
        %v1390 = vmul.bf16 %v1125, 1056980736
        %v1391 = vmul.bf16 %v1126, 1056980736
        %v1392 = vmul.bf16 %v1127, 1056980736
        %v1393 = vmul.bf16 %v1128, 1056980736
        %v1394 = vmul.bf16 %v1129, 1056980736
        %v1395 = vmul.bf16 %v1130, 1056980736
        %v1396 = vmul.bf16 %v1131, 1056980736
        %v1397 = vtanh.bf16.pop %v1381
        %v1398 = vtanh.bf16.pop %v1382
        %v1399 = vtanh.bf16.pop %v1383
        %v1400 = vtanh.bf16.pop %v1384
        %v1401 = vtanh.bf16.pop %v1385
        %v1402 = vtanh.bf16.pop %v1386
        %v1403 = vtanh.bf16.pop %v1387
        %v1404 = vtanh.bf16.pop %v1388
        %v1405 = vtanh.bf16.pop %v1389
        %v1406 = vtanh.bf16.pop %v1390
        %v1407 = vtanh.bf16.pop %v1391
        %v1408 = vtanh.bf16.pop %v1392
        %v1409 = vtanh.bf16.pop %v1393
        %v1410 = vtanh.bf16.pop %v1394
        %v1411 = vtanh.bf16.pop %v1395
        %v1412 = vtanh.bf16.pop %v1396
        %v1413 = vmul.bf16 %v1381, %v1397
        %v1414 = vmul.bf16 %v1382, %v1398
        %v1415 = vmul.bf16 %v1383, %v1399
        %v1416 = vmul.bf16 %v1384, %v1400
        %v1417 = vmul.bf16 %v1385, %v1401
        %v1418 = vmul.bf16 %v1386, %v1402
        %v1419 = vmul.bf16 %v1387, %v1403
        %v1420 = vmul.bf16 %v1388, %v1404
        %v1421 = vmul.bf16 %v1389, %v1405
        %v1422 = vmul.bf16 %v1390, %v1406
        %v1423 = vmul.bf16 %v1391, %v1407
        %v1424 = vmul.bf16 %v1392, %v1408
        %v1425 = vmul.bf16 %v1393, %v1409
        %v1426 = vmul.bf16 %v1394, %v1410
        %v1427 = vmul.bf16 %v1395, %v1411
        %v1428 = vmul.bf16 %v1396, %v1412
        %v1429 = vadd.bf16 %v1381, %v1413
        %v1430 = vadd.bf16 %v1382, %v1414
        %v1431 = vadd.bf16 %v1383, %v1415
        %v1432 = vadd.bf16 %v1384, %v1416
        %v1433 = vadd.bf16 %v1385, %v1417
        %v1434 = vadd.bf16 %v1386, %v1418
        %v1435 = vadd.bf16 %v1387, %v1419
        %v1436 = vadd.bf16 %v1388, %v1420
        %v1437 = vadd.bf16 %v1389, %v1421
        %v1438 = vadd.bf16 %v1390, %v1422
        %v1439 = vadd.bf16 %v1391, %v1423
        %v1440 = vadd.bf16 %v1392, %v1424
        %v1441 = vadd.bf16 %v1393, %v1425
        %v1442 = vadd.bf16 %v1394, %v1426
        %v1443 = vadd.bf16 %v1395, %v1427
        %v1444 = vadd.bf16 %v1396, %v1428
        %v1445 = vmul.bf16 %v1429, %v1365
        %v1446 = vmul.bf16 %v1430, %v1366
        %v1447 = vmul.bf16 %v1431, %v1367
        %v1448 = vmul.bf16 %v1432, %v1368
        %v1449 = vmul.bf16 %v1433, %v1369
        %v1450 = vmul.bf16 %v1434, %v1370
        %v1451 = vmul.bf16 %v1435, %v1371
        %v1452 = vmul.bf16 %v1436, %v1372
        %v1453 = vmul.bf16 %v1437, %v1373
        %v1454 = vmul.bf16 %v1438, %v1374
        %v1455 = vmul.bf16 %v1439, %v1375
        %v1456 = vmul.bf16 %v1440, %v1376
        %v1457 = vmul.bf16 %v1441, %v1377
        %v1458 = vmul.bf16 %v1442, %v1378
        %v1459 = vmul.bf16 %v1443, %v1379
        %v1460 = vmul.bf16 %v1444, %v1380
        %v1461 = vld [vmem:[#allocation4] sm:$0xff]
        %v1462 = vld [vmem:[#allocation4 + $0x8] sm:$0xff]
        %v1463 = vld [vmem:[#allocation4 + $0x10] sm:$0xff]
        %v1464 = vld [vmem:[#allocation4 + $0x18] sm:$0xff]
        %v1465 = vld [vmem:[#allocation4 + $0x20] sm:$0xff]
        %v1466 = vld [vmem:[#allocation4 + $0x28] sm:$0xff]
        %v1467 = vld [vmem:[#allocation4 + $0x30] sm:$0xff]
        %v1468 = vld [vmem:[#allocation4 + $0x38] sm:$0xff]
        %v1469 = vld [vmem:[#allocation4 + $0x40] sm:$0xff]
        %v1470 = vld [vmem:[#allocation4 + $0x48] sm:$0xff]
        %v1471 = vld [vmem:[#allocation4 + $0x50] sm:$0xff]
        %v1472 = vld [vmem:[#allocation4 + $0x58] sm:$0xff]
        %v1473 = vld [vmem:[#allocation4 + $0x60] sm:$0xff]
        %v1474 = vld [vmem:[#allocation4 + $0x68] sm:$0xff]
        %v1475 = vld [vmem:[#allocation4 + $0x70] sm:$0xff]
        %v1476 = vld [vmem:[#allocation4 + $0x78] sm:$0xff]
        %v1477 = vld [vmem:[%s375] sm:$0xf]
        %v1478 = vld [vmem:[%s375 + $0x4] sm:$0xf]
        %v1479 = vld [vmem:[%s375 + $0x8] sm:$0xf]
        %v1480 = vld [vmem:[%s375 + $0xc] sm:$0xf]
        %v1481 = vld [vmem:[%s375 + $0x10] sm:$0xf]
        %v1482 = vld [vmem:[%s375 + $0x14] sm:$0xf]
        %v1483 = vld [vmem:[%s375 + $0x18] sm:$0xf]
        %v1484 = vld [vmem:[%s375 + $0x1c] sm:$0xf]
        %v1485 = vld [vmem:[%s375 + $0x20] sm:$0xf]
        %v1486 = vld [vmem:[%s375 + $0x24] sm:$0xf]
        %v1487 = vld [vmem:[%s375 + $0x28] sm:$0xf]
        %v1488 = vld [vmem:[%s375 + $0x2c] sm:$0xf]
        %v1489 = vld [vmem:[%s375 + $0x30] sm:$0xf]
        %v1490 = vld [vmem:[%s375 + $0x34] sm:$0xf]
        %v1491 = vld [vmem:[%s375 + $0x38] sm:$0xf]
        %v1492 = vld [vmem:[%s375 + $0x3c] sm:$0xf]
        %v1493 = vld [vmem:[%s375 + $0x40] sm:$0xf]
        %v1494 = vld [vmem:[%s375 + $0x44] sm:$0xf]
        %v1495 = vld [vmem:[%s375 + $0x48] sm:$0xf]
        %v1496 = vld [vmem:[%s375 + $0x4c] sm:$0xf]
        %v1497 = vld [vmem:[%s375 + $0x50] sm:$0xf]
        %v1498 = vld [vmem:[%s375 + $0x54] sm:$0xf]
        %v1499 = vld [vmem:[%s375 + $0x58] sm:$0xf]
        %v1500 = vld [vmem:[%s375 + $0x5c] sm:$0xf]
        %v1501 = vld [vmem:[%s375 + $0x60] sm:$0xf]
        %v1502 = vld [vmem:[%s375 + $0x64] sm:$0xf]
        %v1503 = vld [vmem:[%s375 + $0x68] sm:$0xf]
        %v1504 = vld [vmem:[%s375 + $0x6c] sm:$0xf]
        %v1505 = vld [vmem:[%s375 + $0x70] sm:$0xf]
        %v1506 = vld [vmem:[%s375 + $0x74] sm:$0xf]
        %v1507 = vld [vmem:[%s375 + $0x78] sm:$0xf]
        %v1508 = vld [vmem:[%s375 + $0x7c] sm:$0xf]
        %v1541 = vunpack.c.l.b16 %v1477
        %v1542 = vunpack.c.l.b16 %v1478
        %v1543 = vunpack.c.l.b16 %v1479
        %v1544 = vunpack.c.l.b16 %v1480
        %v1545 = vunpack.c.l.b16 %v1481
        %v1546 = vunpack.c.l.b16 %v1482
        %v1547 = vunpack.c.l.b16 %v1483
        %v1548 = vunpack.c.l.b16 %v1484
        %v1549 = vunpack.c.l.b16 %v1485
        %v1550 = vunpack.c.l.b16 %v1486
        %v1551 = vunpack.c.l.b16 %v1487
        %v1552 = vunpack.c.l.b16 %v1488
        %v1553 = vunpack.c.l.b16 %v1489
        %v1554 = vunpack.c.l.b16 %v1490
        %v1555 = vunpack.c.l.b16 %v1491
        %v1556 = vunpack.c.l.b16 %v1492
        %v1557 = vunpack.c.l.b16 %v1493
        %v1558 = vunpack.c.l.b16 %v1494
        %v1559 = vunpack.c.l.b16 %v1495
        %v1560 = vunpack.c.l.b16 %v1496
        %v1561 = vunpack.c.l.b16 %v1497
        %v1562 = vunpack.c.l.b16 %v1498
        %v1563 = vunpack.c.l.b16 %v1499
        %v1564 = vunpack.c.l.b16 %v1500
        %v1565 = vunpack.c.l.b16 %v1501
        %v1566 = vunpack.c.l.b16 %v1502
        %v1567 = vunpack.c.l.b16 %v1503
        %v1568 = vunpack.c.l.b16 %v1504
        %v1569 = vunpack.c.l.b16 %v1505
        %v1570 = vunpack.c.l.b16 %v1506
        %v1571 = vunpack.c.l.b16 %v1507
        %v1572 = vunpack.c.l.b16 %v1508
        %v1573 = vpack.c.b16 %v1542, %v1541
        %v1574 = vpack.c.b16 %v1544, %v1543
        %v1575 = vpack.c.b16 %v1546, %v1545
        %v1576 = vpack.c.b16 %v1548, %v1547
        %v1577 = vpack.c.b16 %v1550, %v1549
        %v1578 = vpack.c.b16 %v1552, %v1551
        %v1579 = vpack.c.b16 %v1554, %v1553
        %v1580 = vpack.c.b16 %v1556, %v1555
        %v1581 = vpack.c.b16 %v1558, %v1557
        %v1582 = vpack.c.b16 %v1560, %v1559
        %v1583 = vpack.c.b16 %v1562, %v1561
        %v1584 = vpack.c.b16 %v1564, %v1563
        %v1585 = vpack.c.b16 %v1566, %v1565
        %v1586 = vpack.c.b16 %v1568, %v1567
        %v1587 = vpack.c.b16 %v1570, %v1569
        %v1588 = vpack.c.b16 %v1572, %v1571
        %1605 = vmatprep.subr.bf16.mxu0 0
        %1606 = vmatpush1.bf16.msra.mxu0 %v1573
        %1607 = vmatprep.subr.bf16.mxu0 0
        %1608 = vmatpush1.bf16.msra.mxu0 %v1574
        %1609 = vmatprep.subr.bf16.mxu0 0
        %1610 = vmatpush1.bf16.msra.mxu0 %v1575
        %1611 = vmatprep.subr.bf16.mxu0 0
        %1612 = vmatpush1.bf16.msra.mxu0 %v1576
        %1613 = vmatprep.subr.bf16.mxu0 0
        %1614 = vmatpush1.bf16.msra.mxu0 %v1577
        %1615 = vmatprep.subr.bf16.mxu0 0
        %1616 = vmatpush1.bf16.msra.mxu0 %v1578
        %1617 = vmatprep.subr.bf16.mxu0 0
        %1618 = vmatpush1.bf16.msra.mxu0 %v1579
        %1619 = vmatprep.subr.bf16.mxu0 0
        %1620 = vmatpush1.bf16.msra.mxu0 %v1580
        %1621 = vmatprep.subr.bf16.mxu0 0
        %1622 = vmatpush1.bf16.msra.mxu0 %v1581
        %1623 = vmatprep.subr.bf16.mxu0 0
        %1624 = vmatpush1.bf16.msra.mxu0 %v1582
        %1625 = vmatprep.subr.bf16.mxu0 0
        %1626 = vmatpush1.bf16.msra.mxu0 %v1583
        %1627 = vmatprep.subr.bf16.mxu0 0
        %1628 = vmatpush1.bf16.msra.mxu0 %v1584
        %1629 = vmatprep.subr.bf16.mxu0 0
        %1630 = vmatpush1.bf16.msra.mxu0 %v1585
        %1631 = vmatprep.subr.bf16.mxu0 0
        %1632 = vmatpush1.bf16.msra.mxu0 %v1586
        %1633 = vmatprep.subr.bf16.mxu0 0
        %1634 = vmatpush1.bf16.msra.mxu0 %v1587
        %1635 = vmatprep.subr.bf16.mxu0 0
        %1636 = vmatpush1.bf16.msra.mxu0 %v1588
        %1637 = vmatprep.mubr.bf16.mxu0 %v1446
        %1638 = vmatmul.mubr.bf16.gmra.mrb[0].mxu0 %v1445
        %v1639 = vpop.f32.mrb[0].mxu0
        %v1640 = vadd.f32 0.0, %v1639
        %v1641 = vpop.f32.mrb[0].mxu0
        %v1642 = vpop.f32.mrb[0].mxu0
        %v1643 = vadd.f32 0.0, %v1642
        %v1644 = vpop.f32.mrb[0].mxu0
        %1645 = vmatprep.mubr.bf16.mxu0 %v1448
        %1646 = vmatmul.mubr.bf16.gmra.mrb[0].mxu0 %v1447
        %v1647 = vpop.f32.mrb[0].mxu0
        %v1648 = vadd.f32 0.0, %v1647
        %v1649 = vpop.f32.mrb[0].mxu0
        %v1650 = vpop.f32.mrb[0].mxu0
        %v1651 = vadd.f32 0.0, %v1650
        %v1652 = vpop.f32.mrb[0].mxu0
        %1653 = vmatprep.mubr.bf16.mxu0 %v1450
        %1654 = vmatmul.mubr.bf16.gmra.mrb[0].mxu0 %v1449
        %v1655 = vpop.f32.mrb[0].mxu0
        %v1656 = vadd.f32 0.0, %v1655
        %v1657 = vpop.f32.mrb[0].mxu0
        %v1658 = vpop.f32.mrb[0].mxu0
        %v1659 = vadd.f32 0.0, %v1658
        %v1660 = vpop.f32.mrb[0].mxu0
        %1661 = vmatprep.mubr.bf16.mxu0 %v1452
        %1662 = vmatmul.mubr.bf16.gmra.mrb[0].mxu0 %v1451
        %v1663 = vpop.f32.mrb[0].mxu0
        %v1664 = vadd.f32 0.0, %v1663
        %v1665 = vpop.f32.mrb[0].mxu0
        %v1666 = vpop.f32.mrb[0].mxu0
        %v1667 = vadd.f32 0.0, %v1666
        %v1668 = vpop.f32.mrb[0].mxu0
        %1669 = vmatprep.mubr.bf16.mxu0 %v1454
        %1670 = vmatmul.mubr.bf16.gmra.mrb[0].mxu0 %v1453
        %v1671 = vpop.f32.mrb[0].mxu0
        %v1672 = vadd.f32 0.0, %v1671
        %v1673 = vpop.f32.mrb[0].mxu0
        %v1674 = vpop.f32.mrb[0].mxu0
        %v1675 = vadd.f32 0.0, %v1674
        %v1676 = vpop.f32.mrb[0].mxu0
        %1677 = vmatprep.mubr.bf16.mxu0 %v1456
        %1678 = vmatmul.mubr.bf16.gmra.mrb[0].mxu0 %v1455
        %v1679 = vpop.f32.mrb[0].mxu0
        %v1680 = vadd.f32 0.0, %v1679
        %v1681 = vpop.f32.mrb[0].mxu0
        %v1682 = vpop.f32.mrb[0].mxu0
        %v1683 = vadd.f32 0.0, %v1682
        %v1684 = vpop.f32.mrb[0].mxu0
        %1685 = vmatprep.mubr.bf16.mxu0 %v1458
        %1686 = vmatmul.mubr.bf16.gmra.mrb[0].mxu0 %v1457
        %v1687 = vpop.f32.mrb[0].mxu0
        %v1688 = vadd.f32 0.0, %v1687
        %v1689 = vpop.f32.mrb[0].mxu0
        %v1690 = vpop.f32.mrb[0].mxu0
        %v1691 = vadd.f32 0.0, %v1690
        %v1692 = vpop.f32.mrb[0].mxu0
        %1693 = vmatprep.mubr.bf16.mxu0 %v1460
        %1694 = vmatmul.mubr.bf16.gmra.mrb[0].mxu0 %v1459
        %v1695 = vpop.f32.mrb[0].mxu0
        %v1696 = vadd.f32 0.0, %v1695
        %v1697 = vpop.f32.mrb[0].mxu0
        %v1698 = vpop.f32.mrb[0].mxu0
        %v1699 = vadd.f32 0.0, %v1698
        %v1700 = vpop.f32.mrb[0].mxu0
        %1701 = vdwg.mxu0
        %v1702 = vadd.f32 %v1461, %v1640
        %v1703 = vadd.f32 %v1462, %v1643
        %v1704 = vadd.f32 %v1463, %v1648
        %v1705 = vadd.f32 %v1464, %v1651
        %v1706 = vadd.f32 %v1465, %v1656
        %v1707 = vadd.f32 %v1466, %v1659
        %v1708 = vadd.f32 %v1467, %v1664
        %v1709 = vadd.f32 %v1468, %v1667
        %v1710 = vadd.f32 %v1469, %v1672
        %v1711 = vadd.f32 %v1470, %v1675
        %v1712 = vadd.f32 %v1471, %v1680
        %v1713 = vadd.f32 %v1472, %v1683
        %v1714 = vadd.f32 %v1473, %v1688
        %v1715 = vadd.f32 %v1474, %v1691
        %v1716 = vadd.f32 %v1475, %v1696
        %v1717 = vadd.f32 %v1476, %v1699
        %1718 = vst [vmem:[#allocation4] sm:$0xff] %v1702
        %1719 = vst [vmem:[#allocation4 + $0x8] sm:$0xff] %v1703
        %1720 = vst [vmem:[#allocation4 + $0x10] sm:$0xff] %v1704
        %1721 = vst [vmem:[#allocation4 + $0x18] sm:$0xff] %v1705
        %1722 = vst [vmem:[#allocation4 + $0x20] sm:$0xff] %v1706
        %1723 = vst [vmem:[#allocation4 + $0x28] sm:$0xff] %v1707
        %1724 = vst [vmem:[#allocation4 + $0x30] sm:$0xff] %v1708
        %1725 = vst [vmem:[#allocation4 + $0x38] sm:$0xff] %v1709
        %1726 = vst [vmem:[#allocation4 + $0x40] sm:$0xff] %v1710
        %1727 = vst [vmem:[#allocation4 + $0x48] sm:$0xff] %v1711
        %1728 = vst [vmem:[#allocation4 + $0x50] sm:$0xff] %v1712
        %1729 = vst [vmem:[#allocation4 + $0x58] sm:$0xff] %v1713
        %1730 = vst [vmem:[#allocation4 + $0x60] sm:$0xff] %v1714
        %1731 = vst [vmem:[#allocation4 + $0x68] sm:$0xff] %v1715
        %1732 = vst [vmem:[#allocation4 + $0x70] sm:$0xff] %v1716
        %1733 = vst [vmem:[#allocation4 + $0x78] sm:$0xff] %v1717
        %p1734 = scmp.eq.s32.totalorder %s29, 2
        // Predicated region
        $region73: #{tpu_custom_call.1} parent=43 // pred_check
          %p1735 = pneg %p1734
        $region74: #{tpu_custom_call.1} parent=43 // pred_check_branch
          %1737 = sbr.rel (%p1735) target = $region76
        $region75: #{tpu_custom_call.1} parent=43 // pred_region
          %v1738 = vld [vmem:[#allocation4] sm:$0xff]
          %v1739 = vld [vmem:[#allocation4 + $0x8] sm:$0xff]
          %v1740 = vld [vmem:[#allocation4 + $0x10] sm:$0xff]
          %v1741 = vld [vmem:[#allocation4 + $0x18] sm:$0xff]
          %v1742 = vld [vmem:[#allocation4 + $0x20] sm:$0xff]
          %v1743 = vld [vmem:[#allocation4 + $0x28] sm:$0xff]
          %v1744 = vld [vmem:[#allocation4 + $0x30] sm:$0xff]
          %v1745 = vld [vmem:[#allocation4 + $0x38] sm:$0xff]
          %v1746 = vld [vmem:[#allocation4 + $0x40] sm:$0xff]
          %v1747 = vld [vmem:[#allocation4 + $0x48] sm:$0xff]
          %v1748 = vld [vmem:[#allocation4 + $0x50] sm:$0xff]
          %v1749 = vld [vmem:[#allocation4 + $0x58] sm:$0xff]
          %v1750 = vld [vmem:[#allocation4 + $0x60] sm:$0xff]
          %v1751 = vld [vmem:[#allocation4 + $0x68] sm:$0xff]
          %v1752 = vld [vmem:[#allocation4 + $0x70] sm:$0xff]
          %v1753 = vld [vmem:[#allocation4 + $0x78] sm:$0xff]
          %v1754 = vpack.c.bf16 %v1739, %v1738
          %v1755 = vpack.c.bf16 %v1741, %v1740
          %v1756 = vpack.c.bf16 %v1743, %v1742
          %v1757 = vpack.c.bf16 %v1745, %v1744
          %v1758 = vpack.c.bf16 %v1747, %v1746
          %v1759 = vpack.c.bf16 %v1749, %v1748
          %v1760 = vpack.c.bf16 %v1751, %v1750
          %v1761 = vpack.c.bf16 %v1753, %v1752
          %v1762 = vld [vmem:[#allocation13] sm:$0xff]
          %v1763 = vld [vmem:[#allocation13 + $0x8] sm:$0xff]
          %v1764 = vld [vmem:[#allocation13 + $0x10] sm:$0xff]
          %v1765 = vld [vmem:[#allocation13 + $0x18] sm:$0xff]
          %v1766 = vld [vmem:[#allocation13 + $0x20] sm:$0xff]
          %v1767 = vld [vmem:[#allocation13 + $0x28] sm:$0xff]
          %v1768 = vld [vmem:[#allocation13 + $0x30] sm:$0xff]
          %v1769 = vld [vmem:[#allocation13 + $0x38] sm:$0xff]
          %v1770 = vld [vmem:[#allocation13 + $0x40] sm:$0xff]
          %v1771 = vld [vmem:[#allocation13 + $0x48] sm:$0xff]
          %v1772 = vld [vmem:[#allocation13 + $0x50] sm:$0xff]
          %v1773 = vld [vmem:[#allocation13 + $0x58] sm:$0xff]
          %v1774 = vld [vmem:[#allocation13 + $0x60] sm:$0xff]
          %v1775 = vld [vmem:[#allocation13 + $0x68] sm:$0xff]
          %v1776 = vld [vmem:[#allocation13 + $0x70] sm:$0xff]
          %v1777 = vld [vmem:[#allocation13 + $0x78] sm:$0xff]
          %v1794 = vunpack.c.l.b16 %v1762
          %v1795 = vunpack.c.h.b16 %v1762
          %v1796 = vunpack.c.l.b16 %v1763
          %v1797 = vunpack.c.h.b16 %v1763
          %v1798 = vunpack.c.l.b16 %v1764
          %v1799 = vunpack.c.h.b16 %v1764
          %v1800 = vunpack.c.l.b16 %v1765
          %v1801 = vunpack.c.h.b16 %v1765
          %v1802 = vunpack.c.l.b16 %v1766
          %v1803 = vunpack.c.h.b16 %v1766
          %v1804 = vunpack.c.l.b16 %v1767
          %v1805 = vunpack.c.h.b16 %v1767
          %v1806 = vunpack.c.l.b16 %v1768
          %v1807 = vunpack.c.h.b16 %v1768
          %v1808 = vunpack.c.l.b16 %v1769
          %v1809 = vunpack.c.h.b16 %v1769
          %v1810 = vunpack.c.l.b16 %v1770
          %v1811 = vunpack.c.h.b16 %v1770
          %v1812 = vunpack.c.l.b16 %v1771
          %v1813 = vunpack.c.h.b16 %v1771
          %v1814 = vunpack.c.l.b16 %v1772
          %v1815 = vunpack.c.h.b16 %v1772
          %v1816 = vunpack.c.l.b16 %v1773
          %v1817 = vunpack.c.h.b16 %v1773
          %v1818 = vunpack.c.l.b16 %v1774
          %v1819 = vunpack.c.h.b16 %v1774
          %v1820 = vunpack.c.l.b16 %v1775
          %v1821 = vunpack.c.h.b16 %v1775
          %v1822 = vunpack.c.l.b16 %v1776
          %v1823 = vunpack.c.h.b16 %v1776
          %v1824 = vunpack.c.l.b16 %v1777
          %v1825 = vunpack.c.h.b16 %v1777
          %v1826 = vpack.c.b16 %v1796, %v1794
          %v1827 = vpack.c.b16 %v1797, %v1795
          %v1828 = vpack.c.b16 %v1800, %v1798
          %v1829 = vpack.c.b16 %v1801, %v1799
          %v1830 = vpack.c.b16 %v1804, %v1802
          %v1831 = vpack.c.b16 %v1805, %v1803
          %v1832 = vpack.c.b16 %v1808, %v1806
          %v1833 = vpack.c.b16 %v1809, %v1807
          %v1834 = vpack.c.b16 %v1812, %v1810
          %v1835 = vpack.c.b16 %v1813, %v1811
          %v1836 = vpack.c.b16 %v1816, %v1814
          %v1837 = vpack.c.b16 %v1817, %v1815
          %v1838 = vpack.c.b16 %v1820, %v1818
          %v1839 = vpack.c.b16 %v1821, %v1819
          %v1840 = vpack.c.b16 %v1824, %v1822
          %v1841 = vpack.c.b16 %v1825, %v1823
          %1858 = vmatprep.subr.bf16.mxu0 %v1827
          %1859 = vmatpush1.bf16.msra.mxu0 %v1826
          %1860 = vmatprep.subr.bf16.mxu0 %v1829
          %1861 = vmatpush1.bf16.msra.mxu0 %v1828
          %1862 = vmatprep.subr.bf16.mxu0 %v1831
          %1863 = vmatpush1.bf16.msra.mxu0 %v1830
          %1864 = vmatprep.subr.bf16.mxu0 %v1833
          %1865 = vmatpush1.bf16.msra.mxu0 %v1832
          %1866 = vmatprep.subr.bf16.mxu0 %v1835
          %1867 = vmatpush1.bf16.msra.mxu0 %v1834
          %1868 = vmatprep.subr.bf16.mxu0 %v1837
          %1869 = vmatpush1.bf16.msra.mxu0 %v1836
          %1870 = vmatprep.subr.bf16.mxu0 %v1839
          %1871 = vmatpush1.bf16.msra.mxu0 %v1838
          %1872 = vmatprep.subr.bf16.mxu0 %v1841
          %1873 = vmatpush1.bf16.msra.mxu0 %v1840
          %1874 = vmatprep.subr.bf16.mxu0 0
          %1875 = vmatpush1.bf16.msra.mxu0 0
          %1876 = vmatprep.subr.bf16.mxu0 0
          %1877 = vmatpush1.bf16.msra.mxu0 0
          %1878 = vmatprep.subr.bf16.mxu0 0
          %1879 = vmatpush1.bf16.msra.mxu0 0
          %1880 = vmatprep.subr.bf16.mxu0 0
          %1881 = vmatpush1.bf16.msra.mxu0 0
          %1882 = vmatprep.subr.bf16.mxu0 0
          %1883 = vmatpush1.bf16.msra.mxu0 0
          %1884 = vmatprep.subr.bf16.mxu0 0
          %1885 = vmatpush1.bf16.msra.mxu0 0
          %1886 = vmatprep.subr.bf16.mxu0 0
          %1887 = vmatpush1.bf16.msra.mxu0 0
          %1888 = vmatprep.subr.bf16.mxu0 0
          %1889 = vmatpush1.bf16.msra.mxu0 0
          %1890 = vmatprep.mubr.bf16.mxu0 0
          %1891 = vmatmul.mubr.bf16.gmra.mrb[0].mxu0 %v1754
          %v1892 = vpop.f32.mrb[0].mxu0
          %v1893 = vadd.f32 0.0, %v1892
          %v1894 = vpop.f32.mrb[0].mxu0
          %v1895 = vadd.f32 0.0, %v1894
          %v1896 = vpop.f32.mrb[0].mxu0
          %v1897 = vadd.f32 0.0, %v1896
          %v1898 = vpop.f32.mrb[0].mxu0
          %v1899 = vadd.f32 0.0, %v1898
          %1900 = vmatprep.mubr.bf16.mxu0 0
          %1901 = vmatmul.mubr.bf16.gmra.mrb[0].mxu0 %v1755
          %v1902 = vpop.f32.mrb[0].mxu0
          %v1903 = vadd.f32 0.0, %v1902
          %v1904 = vpop.f32.mrb[0].mxu0
          %v1905 = vadd.f32 0.0, %v1904
          %v1906 = vpop.f32.mrb[0].mxu0
          %v1907 = vadd.f32 0.0, %v1906
          %v1908 = vpop.f32.mrb[0].mxu0
          %v1909 = vadd.f32 0.0, %v1908
          %1910 = vmatprep.mubr.bf16.mxu0 0
          %1911 = vmatmul.mubr.bf16.gmra.mrb[0].mxu0 %v1756
          %v1912 = vpop.f32.mrb[0].mxu0
          %v1913 = vadd.f32 0.0, %v1912
          %v1914 = vpop.f32.mrb[0].mxu0
          %v1915 = vadd.f32 0.0, %v1914
          %v1916 = vpop.f32.mrb[0].mxu0
          %v1917 = vadd.f32 0.0, %v1916
          %v1918 = vpop.f32.mrb[0].mxu0
          %v1919 = vadd.f32 0.0, %v1918
          %1920 = vmatprep.mubr.bf16.mxu0 0
          %1921 = vmatmul.mubr.bf16.gmra.mrb[0].mxu0 %v1757
          %v1922 = vpop.f32.mrb[0].mxu0
          %v1923 = vadd.f32 0.0, %v1922
          %v1924 = vpop.f32.mrb[0].mxu0
          %v1925 = vadd.f32 0.0, %v1924
          %v1926 = vpop.f32.mrb[0].mxu0
          %v1927 = vadd.f32 0.0, %v1926
          %v1928 = vpop.f32.mrb[0].mxu0
          %v1929 = vadd.f32 0.0, %v1928
          %1930 = vmatprep.mubr.bf16.mxu0 0
          %1931 = vmatmul.mubr.bf16.gmra.mrb[0].mxu0 %v1758
          %v1932 = vpop.f32.mrb[0].mxu0
          %v1933 = vadd.f32 0.0, %v1932
          %v1934 = vpop.f32.mrb[0].mxu0
          %v1935 = vadd.f32 0.0, %v1934
          %v1936 = vpop.f32.mrb[0].mxu0
          %v1937 = vadd.f32 0.0, %v1936
          %v1938 = vpop.f32.mrb[0].mxu0
          %v1939 = vadd.f32 0.0, %v1938
          %1940 = vmatprep.mubr.bf16.mxu0 0
          %1941 = vmatmul.mubr.bf16.gmra.mrb[0].mxu0 %v1759
          %v1942 = vpop.f32.mrb[0].mxu0
          %v1943 = vadd.f32 0.0, %v1942
          %v1944 = vpop.f32.mrb[0].mxu0
          %v1945 = vadd.f32 0.0, %v1944
          %v1946 = vpop.f32.mrb[0].mxu0
          %v1947 = vadd.f32 0.0, %v1946
          %v1948 = vpop.f32.mrb[0].mxu0
          %v1949 = vadd.f32 0.0, %v1948
          %1950 = vmatprep.mubr.bf16.mxu0 0
          %1951 = vmatmul.mubr.bf16.gmra.mrb[0].mxu0 %v1760
          %v1952 = vpop.f32.mrb[0].mxu0
          %v1953 = vadd.f32 0.0, %v1952
          %v1954 = vpop.f32.mrb[0].mxu0
          %v1955 = vadd.f32 0.0, %v1954
          %v1956 = vpop.f32.mrb[0].mxu0
          %v1957 = vadd.f32 0.0, %v1956
          %v1958 = vpop.f32.mrb[0].mxu0
          %v1959 = vadd.f32 0.0, %v1958
          %1960 = vmatprep.mubr.bf16.mxu0 0
          %1961 = vmatmul.mubr.bf16.gmra.mrb[0].mxu0 %v1761
          %v1962 = vpop.f32.mrb[0].mxu0
          %v1963 = vadd.f32 0.0, %v1962
          %v1964 = vpop.f32.mrb[0].mxu0
          %v1965 = vadd.f32 0.0, %v1964
          %v1966 = vpop.f32.mrb[0].mxu0
          %v1967 = vadd.f32 0.0, %v1966
          %v1968 = vpop.f32.mrb[0].mxu0
          %v1969 = vadd.f32 0.0, %v1968
          %1970 = vdwg.mxu0
          %1971 = vst [vmem:[%s422] sm:$0xff] %v1893
          %1972 = vst [vmem:[%s422 + $0x8] sm:$0xff] %v1895
          %1973 = vst [vmem:[%s422 + $0x10] sm:$0xff] %v1897
          %1974 = vst [vmem:[%s422 + $0x18] sm:$0xff] %v1899
          %1975 = vst [vmem:[%s422 + $0x20] sm:$0xff] %v1903
          %1976 = vst [vmem:[%s422 + $0x28] sm:$0xff] %v1905
          %1977 = vst [vmem:[%s422 + $0x30] sm:$0xff] %v1907
          %1978 = vst [vmem:[%s422 + $0x38] sm:$0xff] %v1909
          %1979 = vst [vmem:[%s422 + $0x40] sm:$0xff] %v1913
          %1980 = vst [vmem:[%s422 + $0x48] sm:$0xff] %v1915
          %1981 = vst [vmem:[%s422 + $0x50] sm:$0xff] %v1917
          %1982 = vst [vmem:[%s422 + $0x58] sm:$0xff] %v1919
          %1983 = vst [vmem:[%s422 + $0x60] sm:$0xff] %v1923
          %1984 = vst [vmem:[%s422 + $0x68] sm:$0xff] %v1925
          %1985 = vst [vmem:[%s422 + $0x70] sm:$0xff] %v1927
          %1986 = vst [vmem:[%s422 + $0x78] sm:$0xff] %v1929
          %1987 = vst [vmem:[%s422 + $0x80] sm:$0xff] %v1933
          %1988 = vst [vmem:[%s422 + $0x88] sm:$0xff] %v1935
          %1989 = vst [vmem:[%s422 + $0x90] sm:$0xff] %v1937
          %1990 = vst [vmem:[%s422 + $0x98] sm:$0xff] %v1939
          %1991 = vst [vmem:[%s422 + $0xa0] sm:$0xff] %v1943
          %1992 = vst [vmem:[%s422 + $0xa8] sm:$0xff] %v1945
          %1993 = vst [vmem:[%s422 + $0xb0] sm:$0xff] %v1947
          %1994 = vst [vmem:[%s422 + $0xb8] sm:$0xff] %v1949
          %1995 = vst [vmem:[%s422 + $0xc0] sm:$0xff] %v1953
          %1996 = vst [vmem:[%s422 + $0xc8] sm:$0xff] %v1955
          %1997 = vst [vmem:[%s422 + $0xd0] sm:$0xff] %v1957
          %1998 = vst [vmem:[%s422 + $0xd8] sm:$0xff] %v1959
          %1999 = vst [vmem:[%s422 + $0xe0] sm:$0xff] %v1963
          %2000 = vst [vmem:[%s422 + $0xe8] sm:$0xff] %v1965
          %2001 = vst [vmem:[%s422 + $0xf0] sm:$0xff] %v1967
          %2002 = vst [vmem:[%s422 + $0xf8] sm:$0xff] %v1969
        $region76: #{tpu_custom_call.1} parent=43 // pred_fallthru
          _
        %s2003 = sand.u32 %s190, 1
        %s2004 = scalar_lea.sflag [#allocation7], %s2003
        %s2005 = sand.u32 %s190, 1
        %s2006 = smul.addr %s2005, 256
        %s2007 = scalar_lea.vmem [#allocation14], %s2006
        // Predicated region
        $region77: #{tpu_custom_call.1} parent=43 // pred_check
          %p2008 = pneg %p200
        $region78: #{tpu_custom_call.1} parent=43 // pred_check_branch
          %2010 = sbr.rel (%p2008) target = $region80
        $region79: #{tpu_custom_call.1} parent=43 // pred_region
          %s2011 = smul.u32 16, %s28
          %s2013 = ssub.s32 4096, 4096
          %2014 = vsyncadd %s2004, %s2013
          %s2015 = smul.addr %s2011, 2
          %s2016 = smul.addr %s2015, 128
          %s2017 = scalar_lea.hbm %s6, %s2016
          %s2018 = sshll.u32 %s2007, 4
          %s2019 = int_to_ptr.vmem [resolvable:$true] %s2018
          %2024 = dma.vmem_to_hbm [thread:$0]  %s2019, 4096, %s2017, %s2004, 256, 256, 16
        $region80: #{tpu_custom_call.1} parent=43 // pred_fallthru
          _
      $region44: #{tpu_custom_call.1} parent=5 // pred_fallthru
        _
      %p2025 = scmp.le.s32.totalorder 2, %s19
      // Predicated region
      $region81: #{tpu_custom_call.1} parent=5 // pred_check
        %p2026 = pneg %p2025
      $region82: #{tpu_custom_call.1} parent=5 // pred_check_branch
        %2028 = sbr.rel (%p2026) target = $region84
      $region83: #{tpu_custom_call.1} parent=5 // pred_region
        %s2029 = ssub.s32 %s19, 2
        // Predicated region
        $region85: #{tpu_custom_call.1} parent=83 // pred_check
          %p2030 = pneg %p206
        $region86: #{tpu_custom_call.1} parent=83 // pred_check_branch
          %2032 = sbr.rel (%p2030) target = $region88
        $region87: #{tpu_custom_call.1} parent=83 // pred_region
          %s2033 = sand.u32 %s191, 1
          %s2034 = scalar_lea.sflag [#allocation7], %s2033
          %s2035 = sand.u32 %s191, 1
          %s2036 = smul.addr %s2035, 256
          %s2037 = scalar_lea.vmem [#allocation14], %s2036
          %2038 = dma.done %s2034, 4096
        $region88: #{tpu_custom_call.1} parent=83 // pred_fallthru
          _
      $region84: #{tpu_custom_call.1} parent=5 // pred_fallthru
        _
    $region6: #{tpu_custom_call.1} parent=1 // loop_footer
      %s23 = sadd.s32 1, %s19
    $region7: #{tpu_custom_call.1} parent=1 // loop_footer_branch
      %18 = sbr.rel target = $region3
    $region8: #{tpu_custom_call.1} parent=1 // loop_exit
      _
    %2039 = vsyncpa [#allocation6], 1
    %s2040 = scalar_lea.sflag [#allocation6], 1
    %2041 = vsyncpa %s2040, 1
    %2042 = vsyncpa [#allocation9], 1
    %2043 = vsyncpa [#allocation7], 1
    %s2044 = scalar_lea.sflag [#allocation7], 1
    %2045 = vsyncpa %s2044, 1

</llo_original>
